<compile_context>
chip_gen: v5e
topology: v5e:2x2
jax: 0.10.0
libtpu: 0.0.40
codegen_flags: <defaults>
</compile_context>

<pallas_src>
import functools

import jax
import jax.numpy as jnp
from jax.experimental import pallas as pl
from jax.experimental.pallas import tpu as pltpu


def _round_up(n, m):
    return ((n + m - 1) // m) * m


def _layernorm(h, gamma, beta, eps=1e-5):
    mean = jnp.mean(h, axis=-1, keepdims=True)
    var = jnp.mean((h - mean) ** 2, axis=-1, keepdims=True)
    scale = jax.lax.rsqrt(var + eps) * gamma          # rsqrt -> EUP slot (free-ish)
    return (h - mean) * scale + beta                   # fused scale/shift


def _mlp_kernel(seed_ref,
                x_ref,
                w1_ref, b1_ref, g1_ref, be1_ref,
                w2_ref, b2_ref, g2_ref, be2_ref,
                w3_ref, b3_ref, g3_ref, be3_ref,
                wo_ref, bo_ref,
                out_ref,
                *, dropout_rate):
    tb = x_ref.shape[0]

    if dropout_rate > 0.0:
        # Per-tile seed: independent masks across batch tiles.
        pltpu.prng_seed(seed_ref[0] + pl.program_id(0))
        # One bits draw for all three dropout layers (independent slices).
        bits = pltpu.bitcast(pltpu.prng_random_bits((tb, 64)), jnp.uint32)
        u = (bits >> jnp.uint32(8)).astype(jnp.float32) * (1.0 / (1 << 24))
        keep_scale = jnp.where(u >= jnp.float32(dropout_rate),
                               jnp.float32(1.0 / (1.0 - dropout_rate)),
                               jnp.float32(0.0))

    x = x_ref[...]

    # Block 1: Linear(D -> 32) -> ReLU -> LayerNorm(32) -> Dropout
    h = jnp.dot(x, w1_ref[...], preferred_element_type=jnp.float32) + b1_ref[...]
    h = jnp.maximum(h, 0.0)
    h = _layernorm(h, g1_ref[...], be1_ref[...])
    if dropout_rate > 0.0:
        h = h * keep_scale[:, 0:32]

    # Block 2: Linear(32 -> 16) -> ReLU -> LayerNorm(16) -> Dropout
    h = jnp.dot(h, w2_ref[...], preferred_element_type=jnp.float32) + b2_ref[...]
    h = jnp.maximum(h, 0.0)
    h = _layernorm(h, g2_ref[...], be2_ref[...])
    if dropout_rate > 0.0:
        h = h * keep_scale[:, 32:48]

    # Block 3: Linear(16 -> 8) -> ReLU -> LayerNorm(8) -> Dropout
    h = jnp.dot(h, w3_ref[...], preferred_element_type=jnp.float32) + b3_ref[...]
    h = jnp.maximum(h, 0.0)
    h = _layernorm(h, g3_ref[...], be3_ref[...])
    if dropout_rate > 0.0:
        h = h * keep_scale[:, 48:56]

    # Output head, lane-dense: (1, 8) contracted with (TB, 8) on the 8-dim
    # -> (1, TB) row instead of a (TB, 1) masked-store column.
    head = jax.lax.dot_general(
        wo_ref[...], h,
        dimension_numbers=(((1,), (1,)), ((), ())),
        preferred_element_type=jnp.float32) + bo_ref[...]
    out_ref[...] = head[None]          # (1, 1, TB)


def small_dense_nn_forward(x, params, *, dropout_rate=0.0, seed=0,
                           block_rows=1024):
    """Pallas forward. x: (B, D) float32. Returns (B,) float32."""
    B, D = x.shape
    # Batch tile: big enough to hide per-step overhead, multiple of 8,
    # but never larger than the (8-rounded) batch itself.
    TB = min(block_rows, _round_up(B, 8))
    Bp = _round_up(B, TB)
    if Bp != B:
        x = jnp.pad(x, ((0, Bp - B), (0, 0)))
    num_tiles = Bp // TB

    weight_inputs = (
        params["w1"], params["b1"], params["g1"], params["be1"],
        params["w2"], params["b2"], params["g2"], params["be2"],
        params["w3"], params["b3"], params["g3"], params["be3"],
        params["wo"], params["bo"],
    )

    def const_spec(arr):
        # Full array, constant block index -> DMA'd once, VMEM-resident.
        return pl.BlockSpec(arr.shape, lambda i: (0, 0))

    seed_arr = jnp.asarray([seed], dtype=jnp.int32)

    in_specs = (
        [pl.BlockSpec(memory_space=pltpu.MemorySpace.SMEM)] +      # seed scalar
        [pl.BlockSpec((TB, D), lambda i: (i, 0))] +                # x batch tile
        [const_spec(w) for w in weight_inputs]
    )
    out_spec = pl.BlockSpec((1, 1, TB), lambda i: (i, 0, 0))       # lane-dense rows

    out = pl.pallas_call(
        functools.partial(_mlp_kernel, dropout_rate=dropout_rate),
        out_shape=jax.ShapeDtypeStruct((num_tiles, 1, TB), jnp.float32),
        grid=(num_tiles,),
        in_specs=in_specs,
        out_specs=out_spec,
        compiler_params=pltpu.CompilerParams(
            dimension_semantics=("parallel",),        # shards tiles across v7x TCs
            vmem_limit_bytes=32 * 1024 * 1024,
        ),
    )(seed_arr, x, *weight_inputs)

    return out.reshape(Bp)[:B]


def init_params(key, input_dim, radius):
    """Deterministic init mirroring SmallDenseNN.__init__ shapes.

    Hidden nn.Linear weights (out, in) are stored transposed as (in, out);
    the output head weight keeps PyTorch (out, in) = (1, 8) layout (the kernel
    contracts it directly). LayerNorm gamma=1, beta=0 (PyTorch defaults)."""
    d_in = (2 * radius + 1) ** 2 * input_dim
    sizes = [(d_in, 32), (32, 16), (16, 8), (8, 1)]
    names = ["1", "2", "3", "o"]
    keys = jax.random.split(key, 2 * len(sizes))
    params = {}
    for i, ((fan_in, fan_out), name) in enumerate(zip(sizes, names)):
        bound = 1.0 / (fan_in ** 0.5)
        w = jax.random.uniform(keys[2 * i], (fan_in, fan_out),
                               minval=-bound, maxval=bound, dtype=jnp.float32)
        b = jax.random.uniform(keys[2 * i + 1], (1, fan_out),
                               minval=-bound, maxval=bound, dtype=jnp.float32)
        if name == "o":
            params["wo"] = w.T          # (1, 8) PyTorch layout for the head
            params["bo"] = b            # (1, 1)
        else:
            params[f"w{name}"] = w
            params[f"b{name}"] = b
    for name, width in zip(["1", "2", "3"], [32, 16, 8]):
        params[f"g{name}"] = jnp.ones((1, width), jnp.float32)
        params[f"be{name}"] = jnp.zeros((1, width), jnp.float32)
    return params, d_in


if __name__ == "__main__":
    input_dim = 4
    radius = 1            # -> feature dim D = (2*1+1)^2 * 4 = 36
    batch = 200           # non-multiple of the tile to exercise padding
    block_rows = 128      # small tile for the demo; defaults to 1024 for real use
    dropout_rate = 0.0    # inference-style (deterministic); >0 uses TPU PRNG

    key = jax.random.PRNGKey(0)
    pkey, xkey = jax.random.split(key)
    params, d_in = init_params(pkey, input_dim, radius)
    x = jax.random.normal(xkey, (batch, d_in), dtype=jnp.float32)

    y = small_dense_nn_forward(x, params, dropout_rate=dropout_rate, seed=0,
                               block_rows=block_rows)
    y = jax.block_until_ready(y)
    assert y.shape == (batch,)

    # Pure-JAX reference of the same math (dropout off).
    def ref(x, p):
        def ln(h, g, b):
            m = jnp.mean(h, -1, keepdims=True)
            v = jnp.mean((h - m) ** 2, -1, keepdims=True)
            return (h - m) / jnp.sqrt(v + 1e-5) * g + b
        h = ln(jnp.maximum(x @ p["w1"] + p["b1"], 0.0), p["g1"], p["be1"])
        h = ln(jnp.maximum(h @ p["w2"] + p["b2"], 0.0), p["g2"], p["be2"])
        h = ln(jnp.maximum(h @ p["w3"] + p["b3"], 0.0), p["g3"], p["be3"])
        return jnp.squeeze(h @ p["wo"].T + p["bo"], -1)

    y_ref = ref(x, params)
    assert jnp.allclose(y, y_ref, atol=1e-5, rtol=1e-5)

    # TODO(synk): optional bf16 HBM storage of x/weights (f32 accumulate) for
    # extra HBM-roofline headroom on v6e/v7x if exact f32 match can be relaxed.

    print("KERNEL_OK")
</pallas_src>

<mosaic_0001>
module attributes {stable_mosaic.version = 11 : i64} {
  func.func @_mlp_kernel(%arg0: i32, %arg1: memref<1xi32, #tpu.memory_space<smem>>, %arg2: memref<128x36xf32, #tpu.memory_space<vmem>>, %arg3: memref<36x32xf32, #tpu.memory_space<vmem>>, %arg4: memref<1x32xf32, #tpu.memory_space<vmem>>, %arg5: memref<1x32xf32, #tpu.memory_space<vmem>>, %arg6: memref<1x32xf32, #tpu.memory_space<vmem>>, %arg7: memref<32x16xf32, #tpu.memory_space<vmem>>, %arg8: memref<1x16xf32, #tpu.memory_space<vmem>>, %arg9: memref<1x16xf32, #tpu.memory_space<vmem>>, %arg10: memref<1x16xf32, #tpu.memory_space<vmem>>, %arg11: memref<16x8xf32, #tpu.memory_space<vmem>>, %arg12: memref<1x8xf32, #tpu.memory_space<vmem>>, %arg13: memref<1x8xf32, #tpu.memory_space<vmem>>, %arg14: memref<1x8xf32, #tpu.memory_space<vmem>>, %arg15: memref<1x8xf32, #tpu.memory_space<vmem>>, %arg16: memref<1x1xf32, #tpu.memory_space<vmem>>, %arg17: memref<1x1x128xf32, #tpu.memory_space<vmem>>) attributes {dimension_semantics = [#tpu.dimension_semantics<parallel>], iteration_bounds = array<i64: 2>, scalar_prefetch = 0 : i64, scratch_operands = 0 : i64, tpu.core_type = #tpu.core_type<tc>, window_params = [{transform_indices = @transform_0, window_bounds = array<i64: 1>}, {transform_indices = @transform_1, window_bounds = array<i64: 128, 36>}, {pipeline_mode = #tpu.pipeline_mode<synchronous>, transform_indices = @transform_2, window_bounds = array<i64: 36, 32>}, {pipeline_mode = #tpu.pipeline_mode<synchronous>, transform_indices = @transform_3, window_bounds = array<i64: 1, 32>}, {pipeline_mode = #tpu.pipeline_mode<synchronous>, transform_indices = @transform_4, window_bounds = array<i64: 1, 32>}, {pipeline_mode = #tpu.pipeline_mode<synchronous>, transform_indices = @transform_5, window_bounds = array<i64: 1, 32>}, {pipeline_mode = #tpu.pipeline_mode<synchronous>, transform_indices = @transform_6, window_bounds = array<i64: 32, 16>}, {pipeline_mode = #tpu.pipeline_mode<synchronous>, transform_indices = @transform_7, window_bounds = array<i64: 1, 16>}, {pipeline_mode = #tpu.pipeline_mode<synchronous>, transform_indices = @transform_8, window_bounds = array<i64: 1, 16>}, {pipeline_mode = #tpu.pipeline_mode<synchronous>, transform_indices = @transform_9, window_bounds = array<i64: 1, 16>}, {pipeline_mode = #tpu.pipeline_mode<synchronous>, transform_indices = @transform_10, window_bounds = array<i64: 16, 8>}, {pipeline_mode = #tpu.pipeline_mode<synchronous>, transform_indices = @transform_11, window_bounds = array<i64: 1, 8>}, {pipeline_mode = #tpu.pipeline_mode<synchronous>, transform_indices = @transform_12, window_bounds = array<i64: 1, 8>}, {pipeline_mode = #tpu.pipeline_mode<synchronous>, transform_indices = @transform_13, window_bounds = array<i64: 1, 8>}, {pipeline_mode = #tpu.pipeline_mode<synchronous>, transform_indices = @transform_14, window_bounds = array<i64: 1, 8>}, {pipeline_mode = #tpu.pipeline_mode<synchronous>, transform_indices = @transform_15, window_bounds = array<i64: 1, 1>}, {transform_indices = @transform_16, window_bounds = array<i64: 1, 1, 128>}]} {
    %c0 = arith.constant 0 : index
    %c0_0 = arith.constant 0 : index
    %0 = vector.load %arg2[%c0, %c0_0] : memref<128x36xf32, #tpu.memory_space<vmem>>, vector<128x36xf32>
    %c0_1 = arith.constant 0 : index
    %c0_2 = arith.constant 0 : index
    %1 = vector.load %arg3[%c0_1, %c0_2] : memref<36x32xf32, #tpu.memory_space<vmem>>, vector<36x32xf32>
    %cst = arith.constant dense<0.000000e+00> : vector<128x32xf32>
    %2 = tpu.matmul %0, %1, %cst {dimension_numbers = #tpu.dot_dimension_numbers<[1], [0], [0], [1], [0, 0, 1, 1], [], []>} : vector<128x36xf32>, vector<36x32xf32>, vector<128x32xf32> -> vector<128x32xf32>
    %c0_3 = arith.constant 0 : index
    %c0_4 = arith.constant 0 : index
    %3 = vector.load %arg4[%c0_3, %c0_4] : memref<1x32xf32, #tpu.memory_space<vmem>>, vector<1x32xf32>
    %4 = vector.broadcast %3 : vector<1x32xf32> to vector<128x32xf32>
    %5 = arith.addf %2, %4 : vector<128x32xf32>
    %cst_5 = arith.constant 0.000000e+00 : f32
    %6 = vector.broadcast %cst_5 : f32 to vector<128x32xf32>
    %7 = arith.maximumf %5, %6 : vector<128x32xf32>
    %c0_6 = arith.constant 0 : index
    %c0_7 = arith.constant 0 : index
    %8 = vector.load %arg5[%c0_6, %c0_7] : memref<1x32xf32, #tpu.memory_space<vmem>>, vector<1x32xf32>
    %c0_8 = arith.constant 0 : index
    %c0_9 = arith.constant 0 : index
    %9 = vector.load %arg6[%c0_8, %c0_9] : memref<1x32xf32, #tpu.memory_space<vmem>>, vector<1x32xf32>
    %cst_10 = arith.constant dense<0.000000e+00> : vector<128xf32>
    %10 = vector.multi_reduction <add>, %7, %cst_10 [1] : vector<128x32xf32> to vector<128xf32>
    %11 = vector.shape_cast %10 : vector<128xf32> to vector<128x1xf32>
    %cst_11 = arith.constant 3.200000e+01 : f32
    %12 = vector.broadcast %cst_11 : f32 to vector<128x1xf32>
    %13 = arith.divf %11, %12 : vector<128x1xf32>
    %14 = vector.broadcast %13 : vector<128x1xf32> to vector<128x32xf32>
    %15 = arith.subf %7, %14 : vector<128x32xf32>
    %16 = arith.mulf %15, %15 : vector<128x32xf32>
    %cst_12 = arith.constant dense<0.000000e+00> : vector<128xf32>
    %17 = vector.multi_reduction <add>, %16, %cst_12 [1] : vector<128x32xf32> to vector<128xf32>
    %18 = vector.shape_cast %17 : vector<128xf32> to vector<128x1xf32>
    %cst_13 = arith.constant 3.200000e+01 : f32
    %19 = vector.broadcast %cst_13 : f32 to vector<128x1xf32>
    %20 = arith.divf %18, %19 : vector<128x1xf32>
    %cst_14 = arith.constant 9.99999974E-6 : f32
    %21 = vector.broadcast %cst_14 : f32 to vector<128x1xf32>
    %22 = arith.addf %20, %21 : vector<128x1xf32>
    %23 = math.rsqrt %22 : vector<128x1xf32>
    %24 = vector.broadcast %23 : vector<128x1xf32> to vector<128x32xf32>
    %25 = vector.broadcast %8 : vector<1x32xf32> to vector<128x32xf32>
    %26 = arith.mulf %24, %25 : vector<128x32xf32>
    %27 = vector.broadcast %13 : vector<128x1xf32> to vector<128x32xf32>
    %28 = arith.subf %7, %27 : vector<128x32xf32>
    %29 = arith.mulf %28, %26 : vector<128x32xf32>
    %30 = vector.broadcast %9 : vector<1x32xf32> to vector<128x32xf32>
    %31 = arith.addf %29, %30 : vector<128x32xf32>
    %c0_15 = arith.constant 0 : index
    %c0_16 = arith.constant 0 : index
    %32 = vector.load %arg7[%c0_15, %c0_16] : memref<32x16xf32, #tpu.memory_space<vmem>>, vector<32x16xf32>
    %cst_17 = arith.constant dense<0.000000e+00> : vector<128x16xf32>
    %33 = tpu.matmul %31, %32, %cst_17 {dimension_numbers = #tpu.dot_dimension_numbers<[1], [0], [0], [1], [0, 0, 1, 1], [], []>} : vector<128x32xf32>, vector<32x16xf32>, vector<128x16xf32> -> vector<128x16xf32>
    %c0_18 = arith.constant 0 : index
    %c0_19 = arith.constant 0 : index
    %34 = vector.load %arg8[%c0_18, %c0_19] : memref<1x16xf32, #tpu.memory_space<vmem>>, vector<1x16xf32>
    %35 = vector.broadcast %34 : vector<1x16xf32> to vector<128x16xf32>
    %36 = arith.addf %33, %35 : vector<128x16xf32>
    %cst_20 = arith.constant 0.000000e+00 : f32
    %37 = vector.broadcast %cst_20 : f32 to vector<128x16xf32>
    %38 = arith.maximumf %36, %37 : vector<128x16xf32>
    %c0_21 = arith.constant 0 : index
    %c0_22 = arith.constant 0 : index
    %39 = vector.load %arg9[%c0_21, %c0_22] : memref<1x16xf32, #tpu.memory_space<vmem>>, vector<1x16xf32>
    %c0_23 = arith.constant 0 : index
    %c0_24 = arith.constant 0 : index
    %40 = vector.load %arg10[%c0_23, %c0_24] : memref<1x16xf32, #tpu.memory_space<vmem>>, vector<1x16xf32>
    %cst_25 = arith.constant dense<0.000000e+00> : vector<128xf32>
    %41 = vector.multi_reduction <add>, %38, %cst_25 [1] : vector<128x16xf32> to vector<128xf32>
    %42 = vector.shape_cast %41 : vector<128xf32> to vector<128x1xf32>
    %cst_26 = arith.constant 1.600000e+01 : f32
    %43 = vector.broadcast %cst_26 : f32 to vector<128x1xf32>
    %44 = arith.divf %42, %43 : vector<128x1xf32>
    %45 = vector.broadcast %44 : vector<128x1xf32> to vector<128x16xf32>
    %46 = arith.subf %38, %45 : vector<128x16xf32>
    %47 = arith.mulf %46, %46 : vector<128x16xf32>
    %cst_27 = arith.constant dense<0.000000e+00> : vector<128xf32>
    %48 = vector.multi_reduction <add>, %47, %cst_27 [1] : vector<128x16xf32> to vector<128xf32>
    %49 = vector.shape_cast %48 : vector<128xf32> to vector<128x1xf32>
    %cst_28 = arith.constant 1.600000e+01 : f32
    %50 = vector.broadcast %cst_28 : f32 to vector<128x1xf32>
    %51 = arith.divf %49, %50 : vector<128x1xf32>
    %cst_29 = arith.constant 9.99999974E-6 : f32
    %52 = vector.broadcast %cst_29 : f32 to vector<128x1xf32>
    %53 = arith.addf %51, %52 : vector<128x1xf32>
    %54 = math.rsqrt %53 : vector<128x1xf32>
    %55 = vector.broadcast %54 : vector<128x1xf32> to vector<128x16xf32>
    %56 = vector.broadcast %39 : vector<1x16xf32> to vector<128x16xf32>
    %57 = arith.mulf %55, %56 : vector<128x16xf32>
    %58 = vector.broadcast %44 : vector<128x1xf32> to vector<128x16xf32>
    %59 = arith.subf %38, %58 : vector<128x16xf32>
    %60 = arith.mulf %59, %57 : vector<128x16xf32>
    %61 = vector.broadcast %40 : vector<1x16xf32> to vector<128x16xf32>
    %62 = arith.addf %60, %61 : vector<128x16xf32>
    %c0_30 = arith.constant 0 : index
    %c0_31 = arith.constant 0 : index
    %63 = vector.load %arg11[%c0_30, %c0_31] : memref<16x8xf32, #tpu.memory_space<vmem>>, vector<16x8xf32>
    %cst_32 = arith.constant dense<0.000000e+00> : vector<128x8xf32>
    %64 = tpu.matmul %62, %63, %cst_32 {dimension_numbers = #tpu.dot_dimension_numbers<[1], [0], [0], [1], [0, 0, 1, 1], [], []>} : vector<128x16xf32>, vector<16x8xf32>, vector<128x8xf32> -> vector<128x8xf32>
    %c0_33 = arith.constant 0 : index
    %c0_34 = arith.constant 0 : index
    %65 = vector.load %arg12[%c0_33, %c0_34] : memref<1x8xf32, #tpu.memory_space<vmem>>, vector<1x8xf32>
    %66 = vector.broadcast %65 : vector<1x8xf32> to vector<128x8xf32>
    %67 = arith.addf %64, %66 : vector<128x8xf32>
    %cst_35 = arith.constant 0.000000e+00 : f32
    %68 = vector.broadcast %cst_35 : f32 to vector<128x8xf32>
    %69 = arith.maximumf %67, %68 : vector<128x8xf32>
    %c0_36 = arith.constant 0 : index
    %c0_37 = arith.constant 0 : index
    %70 = vector.load %arg13[%c0_36, %c0_37] : memref<1x8xf32, #tpu.memory_space<vmem>>, vector<1x8xf32>
    %c0_38 = arith.constant 0 : index
    %c0_39 = arith.constant 0 : index
    %71 = vector.load %arg14[%c0_38, %c0_39] : memref<1x8xf32, #tpu.memory_space<vmem>>, vector<1x8xf32>
    %cst_40 = arith.constant dense<0.000000e+00> : vector<128xf32>
    %72 = vector.multi_reduction <add>, %69, %cst_40 [1] : vector<128x8xf32> to vector<128xf32>
    %73 = vector.shape_cast %72 : vector<128xf32> to vector<128x1xf32>
    %cst_41 = arith.constant 8.000000e+00 : f32
    %74 = vector.broadcast %cst_41 : f32 to vector<128x1xf32>
    %75 = arith.divf %73, %74 : vector<128x1xf32>
    %76 = vector.broadcast %75 : vector<128x1xf32> to vector<128x8xf32>
    %77 = arith.subf %69, %76 : vector<128x8xf32>
    %78 = arith.mulf %77, %77 : vector<128x8xf32>
    %cst_42 = arith.constant dense<0.000000e+00> : vector<128xf32>
    %79 = vector.multi_reduction <add>, %78, %cst_42 [1] : vector<128x8xf32> to vector<128xf32>
    %80 = vector.shape_cast %79 : vector<128xf32> to vector<128x1xf32>
    %cst_43 = arith.constant 8.000000e+00 : f32
    %81 = vector.broadcast %cst_43 : f32 to vector<128x1xf32>
    %82 = arith.divf %80, %81 : vector<128x1xf32>
    %cst_44 = arith.constant 9.99999974E-6 : f32
    %83 = vector.broadcast %cst_44 : f32 to vector<128x1xf32>
    %84 = arith.addf %82, %83 : vector<128x1xf32>
    %85 = math.rsqrt %84 : vector<128x1xf32>
    %86 = vector.broadcast %85 : vector<128x1xf32> to vector<128x8xf32>
    %87 = vector.broadcast %70 : vector<1x8xf32> to vector<128x8xf32>
    %88 = arith.mulf %86, %87 : vector<128x8xf32>
    %89 = vector.broadcast %75 : vector<128x1xf32> to vector<128x8xf32>
    %90 = arith.subf %69, %89 : vector<128x8xf32>
    %91 = arith.mulf %90, %88 : vector<128x8xf32>
    %92 = vector.broadcast %71 : vector<1x8xf32> to vector<128x8xf32>
    %93 = arith.addf %91, %92 : vector<128x8xf32>
    %c0_45 = arith.constant 0 : index
    %c0_46 = arith.constant 0 : index
    %94 = vector.load %arg15[%c0_45, %c0_46] : memref<1x8xf32, #tpu.memory_space<vmem>>, vector<1x8xf32>
    %cst_47 = arith.constant dense<0.000000e+00> : vector<1x128xf32>
    %95 = tpu.matmul %94, %93, %cst_47 {dimension_numbers = #tpu.dot_dimension_numbers<[1], [1], [0], [0], [0, 0, 1, 0], [], []>} : vector<1x8xf32>, vector<128x8xf32>, vector<1x128xf32> -> vector<1x128xf32>
    %c0_48 = arith.constant 0 : index
    %c0_49 = arith.constant 0 : index
    %96 = vector.load %arg16[%c0_48, %c0_49] : memref<1x1xf32, #tpu.memory_space<vmem>>, vector<1x1xf32>
    %97 = vector.broadcast %96 : vector<1x1xf32> to vector<1x128xf32>
    %98 = arith.addf %95, %97 : vector<1x128xf32>
    %99 = vector.shape_cast %98 : vector<1x128xf32> to vector<1x1x128xf32>
    %c0_50 = arith.constant 0 : index
    %c0_51 = arith.constant 0 : index
    %c0_52 = arith.constant 0 : index
    %100 = vector.load %arg17[%c0_50, %c0_51, %c0_52] : memref<1x1x128xf32, #tpu.memory_space<vmem>>, vector<1x1x128xf32>
    tpu.vector_store %arg17[%c0_50, %c0_51, %c0_52], %99 {strides = array<i32>} : memref<1x1x128xf32, #tpu.memory_space<vmem>>, vector<1x1x128xf32>,
    return
  }
  func.func @transform_0(%arg0: i32) -> i32 {
    %c0_i32 = arith.constant 0 : i32
    %c0_i32_0 = arith.constant 0 : i32
    return %c0_i32 : i32
  }
  func.func @transform_1(%arg0: i32) -> (i32, i32) {
    %c0_i32 = arith.constant 0 : i32
    %c0_i32_0 = arith.constant 0 : i32
    return %arg0, %c0_i32 : i32, i32
  }
  func.func @transform_2(%arg0: i32) -> (i32, i32) {
    %c0_i32 = arith.constant 0 : i32
    %c0_i32_0 = arith.constant 0 : i32
    %c0_i32_1 = arith.constant 0 : i32
    return %c0_i32, %c0_i32_0 : i32, i32
  }
  func.func @transform_3(%arg0: i32) -> (i32, i32) {
    %c0_i32 = arith.constant 0 : i32
    %c0_i32_0 = arith.constant 0 : i32
    %c0_i32_1 = arith.constant 0 : i32
    return %c0_i32, %c0_i32_0 : i32, i32
  }
  func.func @transform_4(%arg0: i32) -> (i32, i32) {
    %c0_i32 = arith.constant 0 : i32
    %c0_i32_0 = arith.constant 0 : i32
    %c0_i32_1 = arith.constant 0 : i32
    return %c0_i32, %c0_i32_0 : i32, i32
  }
  func.func @transform_5(%arg0: i32) -> (i32, i32) {
    %c0_i32 = arith.constant 0 : i32
    %c0_i32_0 = arith.constant 0 : i32
    %c0_i32_1 = arith.constant 0 : i32
    return %c0_i32, %c0_i32_0 : i32, i32
  }
  func.func @transform_6(%arg0: i32) -> (i32, i32) {
    %c0_i32 = arith.constant 0 : i32
    %c0_i32_0 = arith.constant 0 : i32
    %c0_i32_1 = arith.constant 0 : i32
    return %c0_i32, %c0_i32_0 : i32, i32
  }
  func.func @transform_7(%arg0: i32) -> (i32, i32) {
    %c0_i32 = arith.constant 0 : i32
    %c0_i32_0 = arith.constant 0 : i32
    %c0_i32_1 = arith.constant 0 : i32
    return %c0_i32, %c0_i32_0 : i32, i32
  }
  func.func @transform_8(%arg0: i32) -> (i32, i32) {
    %c0_i32 = arith.constant 0 : i32
    %c0_i32_0 = arith.constant 0 : i32
    %c0_i32_1 = arith.constant 0 : i32
    return %c0_i32, %c0_i32_0 : i32, i32
  }
  func.func @transform_9(%arg0: i32) -> (i32, i32) {
    %c0_i32 = arith.constant 0 : i32
    %c0_i32_0 = arith.constant 0 : i32
    %c0_i32_1 = arith.constant 0 : i32
    return %c0_i32, %c0_i32_0 : i32, i32
  }
  func.func @transform_10(%arg0: i32) -> (i32, i32) {
    %c0_i32 = arith.constant 0 : i32
    %c0_i32_0 = arith.constant 0 : i32
    %c0_i32_1 = arith.constant 0 : i32
    return %c0_i32, %c0_i32_0 : i32, i32
  }
  func.func @transform_11(%arg0: i32) -> (i32, i32) {
    %c0_i32 = arith.constant 0 : i32
    %c0_i32_0 = arith.constant 0 : i32
    %c0_i32_1 = arith.constant 0 : i32
    return %c0_i32, %c0_i32_0 : i32, i32
  }
  func.func @transform_12(%arg0: i32) -> (i32, i32) {
    %c0_i32 = arith.constant 0 : i32
    %c0_i32_0 = arith.constant 0 : i32
    %c0_i32_1 = arith.constant 0 : i32
    return %c0_i32, %c0_i32_0 : i32, i32
  }
  func.func @transform_13(%arg0: i32) -> (i32, i32) {
    %c0_i32 = arith.constant 0 : i32
    %c0_i32_0 = arith.constant 0 : i32
    %c0_i32_1 = arith.constant 0 : i32
    return %c0_i32, %c0_i32_0 : i32, i32
  }
  func.func @transform_14(%arg0: i32) -> (i32, i32) {
    %c0_i32 = arith.constant 0 : i32
    %c0_i32_0 = arith.constant 0 : i32
    %c0_i32_1 = arith.constant 0 : i32
    return %c0_i32, %c0_i32_0 : i32, i32
  }
  func.func @transform_15(%arg0: i32) -> (i32, i32) {
    %c0_i32 = arith.constant 0 : i32
    %c0_i32_0 = arith.constant 0 : i32
    %c0_i32_1 = arith.constant 0 : i32
    return %c0_i32, %c0_i32_0 : i32, i32
  }
  func.func @transform_16(%arg0: i32) -> (i32, i32, i32) {
    %c0_i32 = arith.constant 0 : i32
    %c0_i32_0 = arith.constant 0 : i32
    %c0_i32_1 = arith.constant 0 : i32
    return %arg0, %c0_i32, %c0_i32_0 : i32, i32, i32
  }
}

</mosaic_0001>

<llo_original>
// kernel: tpu_custom_call.1
$region0: #{tpu_custom_call.1}
  #allocation0 [shape = 'u32[]', space=smem, size = 0x4, offset = 0x4, fixed_abs, tag = 'smem constant byte address 0x4 - core index']
  #allocation1 [shape = 'u32[72,128]{1,0:T(1,128)}', space=vmem, size = 0x9000, scoped, tag = 'internal scratch']
  #allocation2 [shape = 's32[1]{0:T(128)S(6)}', space=smem, size = 0x200, scoped, tag = 'scoped memory for tpu_custom_call.1']
  #allocation3 [shape = 'f32[1,1]{1,0:T(1,128)S(1)}', space=vmem, size = 0x200, scoped, tag = 'scoped memory for tpu_custom_call.1']
  %s0 = inlined_call_operand.<no memory space> [shape: s32[1], index: 0, kind: input, shape index: {}]
  %s1 = inlined_call_operand.vmem [shape: f32[256,36], index: 1, kind: input, shape index: {}]
  %s2 = inlined_call_operand.vmem [shape: f32[36,32], index: 2, kind: input, shape index: {}]
  %s3 = inlined_call_operand.vmem [shape: f32[1,32], index: 3, kind: input, shape index: {}]
  %s4 = inlined_call_operand.vmem [shape: f32[1,32], index: 4, kind: input, shape index: {}]
  %s5 = inlined_call_operand.vmem [shape: f32[1,32], index: 5, kind: input, shape index: {}]
  %s6 = inlined_call_operand.vmem [shape: f32[32,16], index: 6, kind: input, shape index: {}]
  %s7 = inlined_call_operand.vmem [shape: f32[1,16], index: 7, kind: input, shape index: {}]
  %s8 = inlined_call_operand.vmem [shape: f32[1,16], index: 8, kind: input, shape index: {}]
  %s9 = inlined_call_operand.vmem [shape: f32[1,16], index: 9, kind: input, shape index: {}]
  %s10 = inlined_call_operand.vmem [shape: f32[16,8], index: 10, kind: input, shape index: {}]
  %s11 = inlined_call_operand.vmem [shape: f32[1,8], index: 11, kind: input, shape index: {}]
  %s12 = inlined_call_operand.vmem [shape: f32[1,8], index: 12, kind: input, shape index: {}]
  %s13 = inlined_call_operand.vmem [shape: f32[1,8], index: 13, kind: input, shape index: {}]
  %s14 = inlined_call_operand.vmem [shape: f32[1,8], index: 14, kind: input, shape index: {}]
  %s15 = inlined_call_operand.<no memory space> [shape: f32[1,1], index: 15, kind: input, shape index: {}]
  %s16 = inlined_call_operand.hbm [shape: f32[2,1,128], index: 16, kind: output, shape index: {}]
  %s17 = sld [smem:[#allocation0]]
  $region97: #{tpu_custom_call.1} parent=0
    _
  %s19 = ssub.s32 1, %s17
  %s20 = scalar_select 0, %s19, %s17
  %21 = sst [smem:[#allocation2]] %s0
  %v22 = vstv %s15
  %23 = vst [vmem:[#allocation3] sm:$0x1] %v22
  $region1: #{tpu_custom_call.1} parent=0
    #allocation4 [shape = 'u8[1024]{0}', space=vmem, size = 0x400, scoped, tag = 'output window, operand 0']
    #allocation5 [shape = 's32[2]{0}', space=sflag, size = 0x8, scoped, tag = 'scoped memory for tpu_custom_call.1']
    %24 = vsyncpa [#allocation5], 0
    %s25 = scalar_lea.sflag [#allocation5], 1
    %26 = vsyncpa %s25, 0
    loop: start=0, step=1, limit=4
    $region2: #{tpu_custom_call.1} parent=1 // loop_pre_header
      _
    $region3: #{tpu_custom_call.1} parent=1 // loop_header
      %s28 = sphi 0, %s32
      %p29 = scmp.ge.s32.totalorder %s28, 4
      %s36 = sphi 0, %s36
      %s38 = sphi 0, %s36
      %s39 = sphi 0, %s38
      %s53 = sphi 0, %s39
      %s59 = sphi 0, %s61
      %s62 = sphi 0, %s59
      %s63 = sphi 0, %s62
      %s79 = sphi 0, %s63
      %s83 = sphi 0, %s83
      %s85 = sphi 0, %s83
      %s86 = sphi 0, %s85
      %s100 = sphi 0, %s86
      %s104 = sphi 0, %s104
      %s106 = sphi 0, %s104
      %s107 = sphi 0, %s106
      %s121 = sphi 0, %s107
      %s125 = sphi 0, %s125
      %s127 = sphi 0, %s125
      %s128 = sphi 0, %s127
      %s142 = sphi 0, %s128
      %s146 = sphi 0, %s146
      %s148 = sphi 0, %s146
      %s149 = sphi 0, %s148
      %s163 = sphi 0, %s149
      %s167 = sphi 0, %s167
      %s169 = sphi 0, %s167
      %s170 = sphi 0, %s169
      %s184 = sphi 0, %s170
      %s188 = sphi 0, %s188
      %s190 = sphi 0, %s188
      %s191 = sphi 0, %s190
      %s205 = sphi 0, %s191
      %s209 = sphi 0, %s209
      %s211 = sphi 0, %s209
      %s212 = sphi 0, %s211
      %s226 = sphi 0, %s212
      %s230 = sphi 0, %s230
      %s232 = sphi 0, %s230
      %s233 = sphi 0, %s232
      %s247 = sphi 0, %s233
      %s251 = sphi 0, %s251
      %s253 = sphi 0, %s251
      %s254 = sphi 0, %s253
      %s268 = sphi 0, %s254
      %s272 = sphi 0, %s272
      %s274 = sphi 0, %s272
      %s275 = sphi 0, %s274
      %s289 = sphi 0, %s275
      %s293 = sphi 0, %s293
      %s295 = sphi 0, %s293
      %s296 = sphi 0, %s295
      %s310 = sphi 0, %s296
      %s314 = sphi 0, %s314
      %s316 = sphi 0, %s314
      %s317 = sphi 0, %s316
      %s331 = sphi 0, %s317
      %s335 = sphi 0, %s335
      %s337 = sphi 0, %s335
      %s338 = sphi 0, %s337
      %s352 = sphi 0, %s338
      %s356 = sphi 0, %s356
      %s358 = sphi 0, %s356
      %s359 = sphi 0, %s358
      %s373 = sphi 0, %s359
      %s379 = sphi 0, %s381
      %s382 = sphi 0, %s379
      %s383 = sphi 0, %s382
      %s399 = sphi 0, %s383
    $region4: #{tpu_custom_call.1} parent=1 // loop_header_branch
      %31 = sbr.rel (%p29) target = $region8
    $region5: #{tpu_custom_call.1} parent=1 // loop_body
      %s33 = ssub.s32 %s28, 1
      %s34 = ssub.s32 %s28, 2
      %s35 = sadd.s32 %s28, 1
      %s37 = sadd.s32 %s36, 1
      %p40 = scmp.eq.s32.totalorder %s28, 1
      %p41 = scmp.ne.s32.totalorder %s36, %s38
      %p42 = scmp.eq.s32.totalorder %s28, 0
      %p43 = por %p41, %p42
      %p44 = scmp.ne.s32.totalorder %s36, %s38
      %p45 = scmp.eq.s32.totalorder %s33, 1
      %p46 = por %p44, %p45
      %p47 = scmp.ne.s32.totalorder %s38, %s39
      %p48 = scmp.eq.s32.totalorder %s33, 0
      %p49 = por %p47, %p48
      %p50 = scmp.ne.s32.totalorder %s38, %s39
      %p51 = scmp.eq.s32.totalorder %s34, 1
      %p52 = por %p50, %p51
      %p54 = scmp.ne.s32.totalorder %s39, %s53
      %p55 = scmp.eq.s32.totalorder %s34, 0
      %p56 = por %p54, %p55
      %s57 = ssub.s32 %s28, %s35
      %p58 = scmp.eq.s32.totalorder %s57, 0
      %s60 = sadd.s32 %s59, 1
      %s61 = scalar_select %p58, %s59, %s60
      %p64 = pneg %p58
      %p65 = scmp.eq.s32.totalorder %s28, 1
      %p66 = por %p64, %p65
      %p67 = scmp.ne.s32.totalorder %s59, %s62
      %p68 = scmp.eq.s32.totalorder %s28, 0
      %p69 = por %p67, %p68
      %p70 = scmp.ne.s32.totalorder %s59, %s62
      %p71 = scmp.eq.s32.totalorder %s33, 1
      %p72 = por %p70, %p71
      %p73 = scmp.ne.s32.totalorder %s62, %s63
      %p74 = scmp.eq.s32.totalorder %s33, 0
      %p75 = por %p73, %p74
      %p76 = scmp.ne.s32.totalorder %s62, %s63
      %p77 = scmp.eq.s32.totalorder %s34, 1
      %p78 = por %p76, %p77
      %p80 = scmp.ne.s32.totalorder %s63, %s79
      %p81 = scmp.eq.s32.totalorder %s34, 0
      %p82 = por %p80, %p81
      %s84 = sadd.s32 %s83, 1
      %p87 = scmp.eq.s32.totalorder %s28, 1
      %p88 = scmp.ne.s32.totalorder %s83, %s85
      %p89 = scmp.eq.s32.totalorder %s28, 0
      %p90 = por %p88, %p89
      %p91 = scmp.ne.s32.totalorder %s83, %s85
      %p92 = scmp.eq.s32.totalorder %s33, 1
      %p93 = por %p91, %p92
      %p94 = scmp.ne.s32.totalorder %s85, %s86
      %p95 = scmp.eq.s32.totalorder %s33, 0
      %p96 = por %p94, %p95
      %p97 = scmp.ne.s32.totalorder %s85, %s86
      %p98 = scmp.eq.s32.totalorder %s34, 1
      %p99 = por %p97, %p98
      %p101 = scmp.ne.s32.totalorder %s86, %s100
      %p102 = scmp.eq.s32.totalorder %s34, 0
      %p103 = por %p101, %p102
      %s105 = sadd.s32 %s104, 1
      %p108 = scmp.eq.s32.totalorder %s28, 1
      %p109 = scmp.ne.s32.totalorder %s104, %s106
      %p110 = scmp.eq.s32.totalorder %s28, 0
      %p111 = por %p109, %p110
      %p112 = scmp.ne.s32.totalorder %s104, %s106
      %p113 = scmp.eq.s32.totalorder %s33, 1
      %p114 = por %p112, %p113
      %p115 = scmp.ne.s32.totalorder %s106, %s107
      %p116 = scmp.eq.s32.totalorder %s33, 0
      %p117 = por %p115, %p116
      %p118 = scmp.ne.s32.totalorder %s106, %s107
      %p119 = scmp.eq.s32.totalorder %s34, 1
      %p120 = por %p118, %p119
      %p122 = scmp.ne.s32.totalorder %s107, %s121
      %p123 = scmp.eq.s32.totalorder %s34, 0
      %p124 = por %p122, %p123
      %s126 = sadd.s32 %s125, 1
      %p129 = scmp.eq.s32.totalorder %s28, 1
      %p130 = scmp.ne.s32.totalorder %s125, %s127
      %p131 = scmp.eq.s32.totalorder %s28, 0
      %p132 = por %p130, %p131
      %p133 = scmp.ne.s32.totalorder %s125, %s127
      %p134 = scmp.eq.s32.totalorder %s33, 1
      %p135 = por %p133, %p134
      %p136 = scmp.ne.s32.totalorder %s127, %s128
      %p137 = scmp.eq.s32.totalorder %s33, 0
      %p138 = por %p136, %p137
      %p139 = scmp.ne.s32.totalorder %s127, %s128
      %p140 = scmp.eq.s32.totalorder %s34, 1
      %p141 = por %p139, %p140
      %p143 = scmp.ne.s32.totalorder %s128, %s142
      %p144 = scmp.eq.s32.totalorder %s34, 0
      %p145 = por %p143, %p144
      %s147 = sadd.s32 %s146, 1
      %p150 = scmp.eq.s32.totalorder %s28, 1
      %p151 = scmp.ne.s32.totalorder %s146, %s148
      %p152 = scmp.eq.s32.totalorder %s28, 0
      %p153 = por %p151, %p152
      %p154 = scmp.ne.s32.totalorder %s146, %s148
      %p155 = scmp.eq.s32.totalorder %s33, 1
      %p156 = por %p154, %p155
      %p157 = scmp.ne.s32.totalorder %s148, %s149
      %p158 = scmp.eq.s32.totalorder %s33, 0
      %p159 = por %p157, %p158
      %p160 = scmp.ne.s32.totalorder %s148, %s149
      %p161 = scmp.eq.s32.totalorder %s34, 1
      %p162 = por %p160, %p161
      %p164 = scmp.ne.s32.totalorder %s149, %s163
      %p165 = scmp.eq.s32.totalorder %s34, 0
      %p166 = por %p164, %p165
      %s168 = sadd.s32 %s167, 1
      %p171 = scmp.eq.s32.totalorder %s28, 1
      %p172 = scmp.ne.s32.totalorder %s167, %s169
      %p173 = scmp.eq.s32.totalorder %s28, 0
      %p174 = por %p172, %p173
      %p175 = scmp.ne.s32.totalorder %s167, %s169
      %p176 = scmp.eq.s32.totalorder %s33, 1
      %p177 = por %p175, %p176
      %p178 = scmp.ne.s32.totalorder %s169, %s170
      %p179 = scmp.eq.s32.totalorder %s33, 0
      %p180 = por %p178, %p179
      %p181 = scmp.ne.s32.totalorder %s169, %s170
      %p182 = scmp.eq.s32.totalorder %s34, 1
      %p183 = por %p181, %p182
      %p185 = scmp.ne.s32.totalorder %s170, %s184
      %p186 = scmp.eq.s32.totalorder %s34, 0
      %p187 = por %p185, %p186
      %s189 = sadd.s32 %s188, 1
      %p192 = scmp.eq.s32.totalorder %s28, 1
      %p193 = scmp.ne.s32.totalorder %s188, %s190
      %p194 = scmp.eq.s32.totalorder %s28, 0
      %p195 = por %p193, %p194
      %p196 = scmp.ne.s32.totalorder %s188, %s190
      %p197 = scmp.eq.s32.totalorder %s33, 1
      %p198 = por %p196, %p197
      %p199 = scmp.ne.s32.totalorder %s190, %s191
      %p200 = scmp.eq.s32.totalorder %s33, 0
      %p201 = por %p199, %p200
      %p202 = scmp.ne.s32.totalorder %s190, %s191
      %p203 = scmp.eq.s32.totalorder %s34, 1
      %p204 = por %p202, %p203
      %p206 = scmp.ne.s32.totalorder %s191, %s205
      %p207 = scmp.eq.s32.totalorder %s34, 0
      %p208 = por %p206, %p207
      %s210 = sadd.s32 %s209, 1
      %p213 = scmp.eq.s32.totalorder %s28, 1
      %p214 = scmp.ne.s32.totalorder %s209, %s211
      %p215 = scmp.eq.s32.totalorder %s28, 0
      %p216 = por %p214, %p215
      %p217 = scmp.ne.s32.totalorder %s209, %s211
      %p218 = scmp.eq.s32.totalorder %s33, 1
      %p219 = por %p217, %p218
      %p220 = scmp.ne.s32.totalorder %s211, %s212
      %p221 = scmp.eq.s32.totalorder %s33, 0
      %p222 = por %p220, %p221
      %p223 = scmp.ne.s32.totalorder %s211, %s212
      %p224 = scmp.eq.s32.totalorder %s34, 1
      %p225 = por %p223, %p224
      %p227 = scmp.ne.s32.totalorder %s212, %s226
      %p228 = scmp.eq.s32.totalorder %s34, 0
      %p229 = por %p227, %p228
      %s231 = sadd.s32 %s230, 1
      %p234 = scmp.eq.s32.totalorder %s28, 1
      %p235 = scmp.ne.s32.totalorder %s230, %s232
      %p236 = scmp.eq.s32.totalorder %s28, 0
      %p237 = por %p235, %p236
      %p238 = scmp.ne.s32.totalorder %s230, %s232
      %p239 = scmp.eq.s32.totalorder %s33, 1
      %p240 = por %p238, %p239
      %p241 = scmp.ne.s32.totalorder %s232, %s233
      %p242 = scmp.eq.s32.totalorder %s33, 0
      %p243 = por %p241, %p242
      %p244 = scmp.ne.s32.totalorder %s232, %s233
      %p245 = scmp.eq.s32.totalorder %s34, 1
      %p246 = por %p244, %p245
      %p248 = scmp.ne.s32.totalorder %s233, %s247
      %p249 = scmp.eq.s32.totalorder %s34, 0
      %p250 = por %p248, %p249
      %s252 = sadd.s32 %s251, 1
      %p255 = scmp.eq.s32.totalorder %s28, 1
      %p256 = scmp.ne.s32.totalorder %s251, %s253
      %p257 = scmp.eq.s32.totalorder %s28, 0
      %p258 = por %p256, %p257
      %p259 = scmp.ne.s32.totalorder %s251, %s253
      %p260 = scmp.eq.s32.totalorder %s33, 1
      %p261 = por %p259, %p260
      %p262 = scmp.ne.s32.totalorder %s253, %s254
      %p263 = scmp.eq.s32.totalorder %s33, 0
      %p264 = por %p262, %p263
      %p265 = scmp.ne.s32.totalorder %s253, %s254
      %p266 = scmp.eq.s32.totalorder %s34, 1
      %p267 = por %p265, %p266
      %p269 = scmp.ne.s32.totalorder %s254, %s268
      %p270 = scmp.eq.s32.totalorder %s34, 0
      %p271 = por %p269, %p270
      %s273 = sadd.s32 %s272, 1
      %p276 = scmp.eq.s32.totalorder %s28, 1
      %p277 = scmp.ne.s32.totalorder %s272, %s274
      %p278 = scmp.eq.s32.totalorder %s28, 0
      %p279 = por %p277, %p278
      %p280 = scmp.ne.s32.totalorder %s272, %s274
      %p281 = scmp.eq.s32.totalorder %s33, 1
      %p282 = por %p280, %p281
      %p283 = scmp.ne.s32.totalorder %s274, %s275
      %p284 = scmp.eq.s32.totalorder %s33, 0
      %p285 = por %p283, %p284
      %p286 = scmp.ne.s32.totalorder %s274, %s275
      %p287 = scmp.eq.s32.totalorder %s34, 1
      %p288 = por %p286, %p287
      %p290 = scmp.ne.s32.totalorder %s275, %s289
      %p291 = scmp.eq.s32.totalorder %s34, 0
      %p292 = por %p290, %p291
      %s294 = sadd.s32 %s293, 1
      %p297 = scmp.eq.s32.totalorder %s28, 1
      %p298 = scmp.ne.s32.totalorder %s293, %s295
      %p299 = scmp.eq.s32.totalorder %s28, 0
      %p300 = por %p298, %p299
      %p301 = scmp.ne.s32.totalorder %s293, %s295
      %p302 = scmp.eq.s32.totalorder %s33, 1
      %p303 = por %p301, %p302
      %p304 = scmp.ne.s32.totalorder %s295, %s296
      %p305 = scmp.eq.s32.totalorder %s33, 0
      %p306 = por %p304, %p305
      %p307 = scmp.ne.s32.totalorder %s295, %s296
      %p308 = scmp.eq.s32.totalorder %s34, 1
      %p309 = por %p307, %p308
      %p311 = scmp.ne.s32.totalorder %s296, %s310
      %p312 = scmp.eq.s32.totalorder %s34, 0
      %p313 = por %p311, %p312
      %s315 = sadd.s32 %s314, 1
      %p318 = scmp.eq.s32.totalorder %s28, 1
      %p319 = scmp.ne.s32.totalorder %s314, %s316
      %p320 = scmp.eq.s32.totalorder %s28, 0
      %p321 = por %p319, %p320
      %p322 = scmp.ne.s32.totalorder %s314, %s316
      %p323 = scmp.eq.s32.totalorder %s33, 1
      %p324 = por %p322, %p323
      %p325 = scmp.ne.s32.totalorder %s316, %s317
      %p326 = scmp.eq.s32.totalorder %s33, 0
      %p327 = por %p325, %p326
      %p328 = scmp.ne.s32.totalorder %s316, %s317
      %p329 = scmp.eq.s32.totalorder %s34, 1
      %p330 = por %p328, %p329
      %p332 = scmp.ne.s32.totalorder %s317, %s331
      %p333 = scmp.eq.s32.totalorder %s34, 0
      %p334 = por %p332, %p333
      %s336 = sadd.s32 %s335, 1
      %p339 = scmp.eq.s32.totalorder %s28, 1
      %p340 = scmp.ne.s32.totalorder %s335, %s337
      %p341 = scmp.eq.s32.totalorder %s28, 0
      %p342 = por %p340, %p341
      %p343 = scmp.ne.s32.totalorder %s335, %s337
      %p344 = scmp.eq.s32.totalorder %s33, 1
      %p345 = por %p343, %p344
      %p346 = scmp.ne.s32.totalorder %s337, %s338
      %p347 = scmp.eq.s32.totalorder %s33, 0
      %p348 = por %p346, %p347
      %p349 = scmp.ne.s32.totalorder %s337, %s338
      %p350 = scmp.eq.s32.totalorder %s34, 1
      %p351 = por %p349, %p350
      %p353 = scmp.ne.s32.totalorder %s338, %s352
      %p354 = scmp.eq.s32.totalorder %s34, 0
      %p355 = por %p353, %p354
      %s357 = sadd.s32 %s356, 1
      %p360 = scmp.eq.s32.totalorder %s28, 1
      %p361 = scmp.ne.s32.totalorder %s356, %s358
      %p362 = scmp.eq.s32.totalorder %s28, 0
      %p363 = por %p361, %p362
      %p364 = scmp.ne.s32.totalorder %s356, %s358
      %p365 = scmp.eq.s32.totalorder %s33, 1
      %p366 = por %p364, %p365
      %p367 = scmp.ne.s32.totalorder %s358, %s359
      %p368 = scmp.eq.s32.totalorder %s33, 0
      %p369 = por %p367, %p368
      %p370 = scmp.ne.s32.totalorder %s358, %s359
      %p371 = scmp.eq.s32.totalorder %s34, 1
      %p372 = por %p370, %p371
      %p374 = scmp.ne.s32.totalorder %s359, %s373
      %p375 = scmp.eq.s32.totalorder %s34, 0
      %p376 = por %p374, %p375
      %s377 = ssub.s32 %s28, %s35
      %p378 = scmp.eq.s32.totalorder %s377, 0
      %s380 = sadd.s32 %s379, 1
      %s381 = scalar_select %p378, %s379, %s380
      %p384 = pneg %p378
      %p385 = scmp.eq.s32.totalorder %s28, 1
      %p386 = por %p384, %p385
      %p387 = scmp.ne.s32.totalorder %s379, %s382
      %p388 = scmp.eq.s32.totalorder %s28, 0
      %p389 = por %p387, %p388
      %p390 = scmp.ne.s32.totalorder %s379, %s382
      %p391 = scmp.eq.s32.totalorder %s33, 1
      %p392 = por %p390, %p391
      %p393 = scmp.ne.s32.totalorder %s382, %s383
      %p394 = scmp.eq.s32.totalorder %s33, 0
      %p395 = por %p393, %p394
      %p396 = scmp.ne.s32.totalorder %s382, %s383
      %p397 = scmp.eq.s32.totalorder %s34, 1
      %p398 = por %p396, %p397
      %p400 = scmp.ne.s32.totalorder %s383, %s399
      %p401 = scmp.eq.s32.totalorder %s34, 0
      %p402 = por %p400, %p401
      %p403 = scmp.le.s32.totalorder 1, %s28
      %p404 = scmp.lt.s32.totalorder %s28, 3
      %p405 = pnand %p403, %p404
      %p406 = pneg %p405
      // Predicated region
      $region9: #{tpu_custom_call.1} parent=5 // pred_check
        _
      $region10: #{tpu_custom_call.1} parent=5 // pred_check_branch
        %408 = sbr.rel (%p405) target = $region12
      $region11: #{tpu_custom_call.1} parent=5 // pred_region
        %s409 = ssub.s32 %s28, 1
        // Predicated region
        $region13: #{tpu_custom_call.1} parent=11 // pred_check
          %p410 = pneg %p49
        $region14: #{tpu_custom_call.1} parent=11 // pred_check_branch
          %412 = sbr.rel (%p410) target = $region16
        $region15: #{tpu_custom_call.1} parent=11 // pred_region
          _
        $region16: #{tpu_custom_call.1} parent=11 // pred_fallthru
          _
        // Predicated region
        $region17: #{tpu_custom_call.1} parent=11 // pred_check
          %p413 = pneg %p96
        $region18: #{tpu_custom_call.1} parent=11 // pred_check_branch
          %415 = sbr.rel (%p413) target = $region20
        $region19: #{tpu_custom_call.1} parent=11 // pred_region
          _
        $region20: #{tpu_custom_call.1} parent=11 // pred_fallthru
          _
        // Predicated region
        $region21: #{tpu_custom_call.1} parent=11 // pred_check
          %p416 = pneg %p117
        $region22: #{tpu_custom_call.1} parent=11 // pred_check_branch
          %418 = sbr.rel (%p416) target = $region24
        $region23: #{tpu_custom_call.1} parent=11 // pred_region
          _
        $region24: #{tpu_custom_call.1} parent=11 // pred_fallthru
          _
        // Predicated region
        $region25: #{tpu_custom_call.1} parent=11 // pred_check
          %p419 = pneg %p138
        $region26: #{tpu_custom_call.1} parent=11 // pred_check_branch
          %421 = sbr.rel (%p419) target = $region28
        $region27: #{tpu_custom_call.1} parent=11 // pred_region
          _
        $region28: #{tpu_custom_call.1} parent=11 // pred_fallthru
          _
        // Predicated region
        $region29: #{tpu_custom_call.1} parent=11 // pred_check
          %p422 = pneg %p159
        $region30: #{tpu_custom_call.1} parent=11 // pred_check_branch
          %424 = sbr.rel (%p422) target = $region32
        $region31: #{tpu_custom_call.1} parent=11 // pred_region
          _
        $region32: #{tpu_custom_call.1} parent=11 // pred_fallthru
          _
        // Predicated region
        $region33: #{tpu_custom_call.1} parent=11 // pred_check
          %p425 = pneg %p180
        $region34: #{tpu_custom_call.1} parent=11 // pred_check_branch
          %427 = sbr.rel (%p425) target = $region36
        $region35: #{tpu_custom_call.1} parent=11 // pred_region
          _
        $region36: #{tpu_custom_call.1} parent=11 // pred_fallthru
          _
        // Predicated region
        $region37: #{tpu_custom_call.1} parent=11 // pred_check
          %p428 = pneg %p201
        $region38: #{tpu_custom_call.1} parent=11 // pred_check_branch
          %430 = sbr.rel (%p428) target = $region40
        $region39: #{tpu_custom_call.1} parent=11 // pred_region
          _
        $region40: #{tpu_custom_call.1} parent=11 // pred_fallthru
          _
        // Predicated region
        $region41: #{tpu_custom_call.1} parent=11 // pred_check
          %p431 = pneg %p222
        $region42: #{tpu_custom_call.1} parent=11 // pred_check_branch
          %433 = sbr.rel (%p431) target = $region44
        $region43: #{tpu_custom_call.1} parent=11 // pred_region
          _
        $region44: #{tpu_custom_call.1} parent=11 // pred_fallthru
          _
        // Predicated region
        $region45: #{tpu_custom_call.1} parent=11 // pred_check
          %p434 = pneg %p243
        $region46: #{tpu_custom_call.1} parent=11 // pred_check_branch
          %436 = sbr.rel (%p434) target = $region48
        $region47: #{tpu_custom_call.1} parent=11 // pred_region
          _
        $region48: #{tpu_custom_call.1} parent=11 // pred_fallthru
          _
        // Predicated region
        $region49: #{tpu_custom_call.1} parent=11 // pred_check
          %p437 = pneg %p264
        $region50: #{tpu_custom_call.1} parent=11 // pred_check_branch
          %439 = sbr.rel (%p437) target = $region52
        $region51: #{tpu_custom_call.1} parent=11 // pred_region
          _
        $region52: #{tpu_custom_call.1} parent=11 // pred_fallthru
          _
        // Predicated region
        $region53: #{tpu_custom_call.1} parent=11 // pred_check
          %p440 = pneg %p285
        $region54: #{tpu_custom_call.1} parent=11 // pred_check_branch
          %442 = sbr.rel (%p440) target = $region56
        $region55: #{tpu_custom_call.1} parent=11 // pred_region
          _
        $region56: #{tpu_custom_call.1} parent=11 // pred_fallthru
          _
        // Predicated region
        $region57: #{tpu_custom_call.1} parent=11 // pred_check
          %p443 = pneg %p306
        $region58: #{tpu_custom_call.1} parent=11 // pred_check_branch
          %445 = sbr.rel (%p443) target = $region60
        $region59: #{tpu_custom_call.1} parent=11 // pred_region
          _
        $region60: #{tpu_custom_call.1} parent=11 // pred_fallthru
          _
        // Predicated region
        $region61: #{tpu_custom_call.1} parent=11 // pred_check
          %p446 = pneg %p327
        $region62: #{tpu_custom_call.1} parent=11 // pred_check_branch
          %448 = sbr.rel (%p446) target = $region64
        $region63: #{tpu_custom_call.1} parent=11 // pred_region
          _
        $region64: #{tpu_custom_call.1} parent=11 // pred_fallthru
          _
        // Predicated region
        $region65: #{tpu_custom_call.1} parent=11 // pred_check
          %p449 = pneg %p348
        $region66: #{tpu_custom_call.1} parent=11 // pred_check_branch
          %451 = sbr.rel (%p449) target = $region68
        $region67: #{tpu_custom_call.1} parent=11 // pred_region
          _
        $region68: #{tpu_custom_call.1} parent=11 // pred_fallthru
          _
        // Predicated region
        $region69: #{tpu_custom_call.1} parent=11 // pred_check
          %p452 = pneg %p369
        $region70: #{tpu_custom_call.1} parent=11 // pred_check_branch
          %454 = sbr.rel (%p452) target = $region72
        $region71: #{tpu_custom_call.1} parent=11 // pred_region
          _
        $region72: #{tpu_custom_call.1} parent=11 // pred_fallthru
          _
      $region12: #{tpu_custom_call.1} parent=5 // pred_fallthru
        _
      %p455 = scmp.lt.s32.totalorder %s28, 2
      // Predicated region
      $region73: #{tpu_custom_call.1} parent=5 // pred_check
        %p456 = pneg %p455
      $region74: #{tpu_custom_call.1} parent=5 // pred_check_branch
        %458 = sbr.rel (%p456) target = $region76
      $region75: #{tpu_custom_call.1} parent=5 // pred_region
        // Predicated region
        $region77: #{tpu_custom_call.1} parent=75 // pred_check
          %p459 = pneg %p69
        $region78: #{tpu_custom_call.1} parent=75 // pred_check_branch
          %461 = sbr.rel (%p459) target = $region80
        $region79: #{tpu_custom_call.1} parent=75 // pred_region
          %s462 = smul.u32 16, %s28
          %p463 = scmp.lt.s32.totalorder %s462, 31
          %s464 = scalar_select %p463, %s462, 31
          %s465 = smul.addr %s464, 8
          %s466 = scalar_lea.vmem %s1, %s465
          %s467 = smul.u32 16, %s28
        $region80: #{tpu_custom_call.1} parent=75 // pred_fallthru
          _
      $region76: #{tpu_custom_call.1} parent=5 // pred_fallthru
        _
      %p468 = scmp.le.s32.totalorder 1, %s28
      %p469 = scmp.lt.s32.totalorder %s28, 3
      %p470 = pnand %p468, %p469
      %p471 = pneg %p470
      // Predicated region
      $region81: #{tpu_custom_call.1} parent=5 // pred_check
        _
      $region82: #{tpu_custom_call.1} parent=5 // pred_check_branch
        %473 = sbr.rel (%p470) target = $region84
      $region83: #{tpu_custom_call.1} parent=5 // pred_region
        %s474 = ssub.s32 %s28, 1
        %p475 = pneg %p49
        %p476 = pneg %p46
        %s477 = smul.u32 16, %s33
        %p478 = scmp.lt.s32.totalorder %s477, 31
        %s479 = scalar_select %p478, %s477, 31
        %s480 = smul.addr %s479, 8
        %s481 = scalar_lea.vmem %s1, %s480
        %p482 = pneg %p75
        %p483 = pneg %p72
        %p484 = pneg %p96
        %p485 = pneg %p93
        %p486 = pneg %p117
        %p487 = pneg %p114
        %p488 = pneg %p138
        %p489 = pneg %p135
        %p490 = pneg %p159
        %p491 = pneg %p156
        %p492 = pneg %p180
        %p493 = pneg %p177
        %p494 = pneg %p201
        %p495 = pneg %p198
        %p496 = pneg %p222
        %p497 = pneg %p219
        %p498 = pneg %p243
        %p499 = pneg %p240
        %p500 = pneg %p264
        %p501 = pneg %p261
        %p502 = pneg %p285
        %p503 = pneg %p282
        %p504 = pneg %p306
        %p505 = pneg %p303
        %p506 = pneg %p327
        %p507 = pneg %p324
        %p508 = pneg %p348
        %p509 = pneg %p345
        %p510 = pneg %p369
        %p511 = pneg %p366
        %p512 = pneg %p395
        %p513 = pneg %p392
        %s514 = sand.u32 %s382, 1
        %s515 = scalar_lea.sflag [#allocation5], %s514
        %s516 = sand.u32 %s382, 1
        %s517 = scalar_lea.vmem [#allocation4], %s516
        %s518 = smul.u32 16, %s33
        %p519 = scmp.lt.s32.totalorder %s518, 31
        %s520 = scalar_select %p519, %s518, 31
        %s521 = smul.addr %s520, 8
        %s522 = scalar_lea.vmem %s1, %s521
        %s523 = smul.u32 16, %s33
        %v524 = vld [vmem:[%s522] sm:$0xff]
        %v525 = vld [vmem:[%s522 + $0x8] sm:$0xff]
        %v526 = vld [vmem:[%s522 + $0x10] sm:$0xff]
        %v527 = vld [vmem:[%s522 + $0x18] sm:$0xff]
        %v528 = vld [vmem:[%s522 + $0x20] sm:$0xff]
        %v529 = vld [vmem:[%s522 + $0x28] sm:$0xff]
        %v530 = vld [vmem:[%s522 + $0x30] sm:$0xff]
        %v531 = vld [vmem:[%s522 + $0x38] sm:$0xff]
        %v532 = vld [vmem:[%s522 + $0x40] sm:$0xff]
        %v533 = vld [vmem:[%s522 + $0x48] sm:$0xff]
        %v534 = vld [vmem:[%s522 + $0x50] sm:$0xff]
        %v535 = vld [vmem:[%s522 + $0x58] sm:$0xff]
        %v536 = vld [vmem:[%s522 + $0x60] sm:$0xff]
        %v537 = vld [vmem:[%s522 + $0x68] sm:$0xff]
        %v538 = vld [vmem:[%s522 + $0x70] sm:$0xff]
        %v539 = vld [vmem:[%s522 + $0x78] sm:$0xff]
        %v540 = vld [vmem:[%s2] sm:$0xff]
        %v541 = vld [vmem:[%s2 + $0x8] sm:$0xff]
        %v542 = vld [vmem:[%s2 + $0x10] sm:$0xff]
        %v543 = vld [vmem:[%s2 + $0x18] sm:$0xff]
        %v544 = vld [vmem:[%s2 + $0x20] sm:$0xf]
        %v545 = vld [vmem:[%s3] sm:$0x1]
        %v547 = vperm.slane %v545, 0
        %vm549 = vcmask 293888
        %v551 = vsel %vm549, %v524, 0
        %v554 = vsel %vm549, %v525, 0
        %v557 = vsel %vm549, %v526, 0
        %v560 = vsel %vm549, %v527, 0
        %v563 = vsel %vm549, %v528, 0
        %v566 = vsel %vm549, %v529, 0
        %v569 = vsel %vm549, %v530, 0
        %v572 = vsel %vm549, %v531, 0
        %v575 = vsel %vm549, %v532, 0
        %v578 = vsel %vm549, %v533, 0
        %v581 = vsel %vm549, %v534, 0
        %v584 = vsel %vm549, %v535, 0
        %v587 = vsel %vm549, %v536, 0
        %v590 = vsel %vm549, %v537, 0
        %v593 = vsel %vm549, %v538, 0
        %v596 = vsel %vm549, %v539, 0
        %vm598 = vcmask 1043456
        %v600 = vsel %vm598, %v544, 0
        %602 = vmatpush.msra.mxu0 0.0
        %603 = vmatpush.msra.mxu0 0.0
        %604 = vmatpush.msra.mxu0 0.0
        %605 = vmatpush.msra.mxu0 0.0
        %606 = vmatpush.msra.mxu0 0.0
        %607 = vmatpush.msra.mxu0 0.0
        %608 = vmatpush.msra.mxu0 0.0
        %609 = vmatpush.msra.mxu0 0.0
        %610 = vmatpush.msra.mxu0 0.0
        %611 = vmatpush.msra.mxu0 0.0
        %612 = vmatpush.msra.mxu0 0.0
        %613 = vmatpush.msra.mxu0 %v600
        %614 = vmatpush.msra.mxu0 %v543
        %615 = vmatpush.msra.mxu0 %v542
        %616 = vmatpush.msra.mxu0 %v541
        %617 = vmatpush.msra.mxu0 %v540
        %618 = vmatmul.f32.gmra.mxu0 %v551
        %v619 = vpop.f32.mrf.mxu0
        %v620 = vadd.f32 %v547, %v619
        %621 = vmatmul.f32.gmra.mxu0 %v554
        %v622 = vpop.f32.mrf.mxu0
        %v623 = vadd.f32 %v547, %v622
        %624 = vmatmul.f32.gmra.mxu0 %v557
        %v625 = vpop.f32.mrf.mxu0
        %v626 = vadd.f32 %v547, %v625
        %627 = vmatmul.f32.gmra.mxu0 %v560
        %v628 = vpop.f32.mrf.mxu0
        %v629 = vadd.f32 %v547, %v628
        %630 = vmatmul.f32.gmra.mxu0 %v563
        %v631 = vpop.f32.mrf.mxu0
        %v632 = vadd.f32 %v547, %v631
        %633 = vmatmul.f32.gmra.mxu0 %v566
        %v634 = vpop.f32.mrf.mxu0
        %v635 = vadd.f32 %v547, %v634
        %636 = vmatmul.f32.gmra.mxu0 %v569
        %v637 = vpop.f32.mrf.mxu0
        %v638 = vadd.f32 %v547, %v637
        %639 = vmatmul.f32.gmra.mxu0 %v572
        %v640 = vpop.f32.mrf.mxu0
        %v641 = vadd.f32 %v547, %v640
        %642 = vmatmul.f32.gmra.mxu0 %v575
        %v643 = vpop.f32.mrf.mxu0
        %v644 = vadd.f32 %v547, %v643
        %645 = vmatmul.f32.gmra.mxu0 %v578
        %v646 = vpop.f32.mrf.mxu0
        %v647 = vadd.f32 %v547, %v646
        %648 = vmatmul.f32.gmra.mxu0 %v581
        %v649 = vpop.f32.mrf.mxu0
        %v650 = vadd.f32 %v547, %v649
        %651 = vmatmul.f32.gmra.mxu0 %v584
        %v652 = vpop.f32.mrf.mxu0
        %v653 = vadd.f32 %v547, %v652
        %654 = vmatmul.f32.gmra.mxu0 %v587
        %v655 = vpop.f32.mrf.mxu0
        %v656 = vadd.f32 %v547, %v655
        %657 = vmatmul.f32.gmra.mxu0 %v590
        %v658 = vpop.f32.mrf.mxu0
        %v659 = vadd.f32 %v547, %v658
        %660 = vmatmul.f32.gmra.mxu0 %v593
        %v661 = vpop.f32.mrf.mxu0
        %v662 = vadd.f32 %v547, %v661
        %663 = vmatmul.f32.gmra.mxu0 %v596
        %v664 = vpop.f32.mrf.mxu0
        %v665 = vadd.f32 %v547, %v664
        %666 = vdwg.mxu0
        %v667 = vmax.f32 %v620, 0.0
        %v668 = vmax.f32 %v623, 0.0
        %v669 = vmax.f32 %v626, 0.0
        %v670 = vmax.f32 %v629, 0.0
        %v671 = vmax.f32 %v632, 0.0
        %v672 = vmax.f32 %v635, 0.0
        %v673 = vmax.f32 %v638, 0.0
        %v674 = vmax.f32 %v641, 0.0
        %v675 = vmax.f32 %v644, 0.0
        %v676 = vmax.f32 %v647, 0.0
        %v677 = vmax.f32 %v650, 0.0
        %v678 = vmax.f32 %v653, 0.0
        %v679 = vmax.f32 %v656, 0.0
        %v680 = vmax.f32 %v659, 0.0
        %v681 = vmax.f32 %v662, 0.0
        %v682 = vmax.f32 %v665, 0.0
        %v683 = vld [vmem:[%s4] sm:$0x1]
        %v684 = vld [vmem:[%s5] sm:$0x1]
        %vm685 = vcmask 261120
        %v686 = vsel %vm685, %v667, 0.0
        %687 = vadd.xlane.f32.xlu0 %v686
        %v688 = vpop.xlane.xlu0 %687
        %v689 = vsel %vm685, %v668, 0.0
        %690 = vadd.xlane.f32.xlu0 %v689
        %v691 = vpop.xlane.xlu0 %690
        %v692 = vsel %vm685, %v669, 0.0
        %693 = vadd.xlane.f32.xlu0 %v692
        %v694 = vpop.xlane.xlu0 %693
        %v695 = vsel %vm685, %v670, 0.0
        %696 = vadd.xlane.f32.xlu0 %v695
        %v697 = vpop.xlane.xlu0 %696
        %v698 = vsel %vm685, %v671, 0.0
        %699 = vadd.xlane.f32.xlu0 %v698
        %v700 = vpop.xlane.xlu0 %699
        %v701 = vsel %vm685, %v672, 0.0
        %702 = vadd.xlane.f32.xlu0 %v701
        %v703 = vpop.xlane.xlu0 %702
        %v704 = vsel %vm685, %v673, 0.0
        %705 = vadd.xlane.f32.xlu0 %v704
        %v706 = vpop.xlane.xlu0 %705
        %v707 = vsel %vm685, %v674, 0.0
        %708 = vadd.xlane.f32.xlu0 %v707
        %v709 = vpop.xlane.xlu0 %708
        %v710 = vsel %vm685, %v675, 0.0
        %711 = vadd.xlane.f32.xlu0 %v710
        %v712 = vpop.xlane.xlu0 %711
        %v713 = vsel %vm685, %v676, 0.0
        %714 = vadd.xlane.f32.xlu0 %v713
        %v715 = vpop.xlane.xlu0 %714
        %v716 = vsel %vm685, %v677, 0.0
        %717 = vadd.xlane.f32.xlu0 %v716
        %v718 = vpop.xlane.xlu0 %717
        %v719 = vsel %vm685, %v678, 0.0
        %720 = vadd.xlane.f32.xlu0 %v719
        %v721 = vpop.xlane.xlu0 %720
        %v722 = vsel %vm685, %v679, 0.0
        %723 = vadd.xlane.f32.xlu0 %v722
        %v724 = vpop.xlane.xlu0 %723
        %v725 = vsel %vm685, %v680, 0.0
        %726 = vadd.xlane.f32.xlu0 %v725
        %v727 = vpop.xlane.xlu0 %726
        %v728 = vsel %vm685, %v681, 0.0
        %729 = vadd.xlane.f32.xlu0 %v728
        %v730 = vpop.xlane.xlu0 %729
        %v731 = vsel %vm685, %v682, 0.0
        %732 = vadd.xlane.f32.xlu0 %v731
        %v733 = vpop.xlane.xlu0 %732
        %v734 = vrcp.pop 32.0
        %v735 = vmul.f32 32.0, %v734
        %v736 = vsub.f32 1.0, %v735
        %v737 = vmul.f32 %v734, %v736
        %v738 = vadd.f32 %v734, %v737
        %vm739 = vweird.f32 %v734
        %v740 = vsel %vm739, %v734, %v738
        %v741 = vmul.f32 %v688, %v740
        %v742 = vmul.f32 %v691, %v740
        %v743 = vmul.f32 %v694, %v740
        %v744 = vmul.f32 %v697, %v740
        %v745 = vmul.f32 %v700, %v740
        %v746 = vmul.f32 %v703, %v740
        %v747 = vmul.f32 %v706, %v740
        %v748 = vmul.f32 %v709, %v740
        %v749 = vmul.f32 %v712, %v740
        %v750 = vmul.f32 %v715, %v740
        %v751 = vmul.f32 %v718, %v740
        %v752 = vmul.f32 %v721, %v740
        %v753 = vmul.f32 %v724, %v740
        %v754 = vmul.f32 %v727, %v740
        %v755 = vmul.f32 %v730, %v740
        %v756 = vmul.f32 %v733, %v740
        %v757 = vsub.f32 %v667, %v741
        %v758 = vsub.f32 %v668, %v742
        %v759 = vsub.f32 %v669, %v743
        %v760 = vsub.f32 %v670, %v744
        %v761 = vsub.f32 %v671, %v745
        %v762 = vsub.f32 %v672, %v746
        %v763 = vsub.f32 %v673, %v747
        %v764 = vsub.f32 %v674, %v748
        %v765 = vsub.f32 %v675, %v749
        %v766 = vsub.f32 %v676, %v750
        %v767 = vsub.f32 %v677, %v751
        %v768 = vsub.f32 %v678, %v752
        %v769 = vsub.f32 %v679, %v753
        %v770 = vsub.f32 %v680, %v754
        %v771 = vsub.f32 %v681, %v755
        %v772 = vsub.f32 %v682, %v756
        %v773 = vmul.f32 %v757, %v757
        %v774 = vmul.f32 %v758, %v758
        %v775 = vmul.f32 %v759, %v759
        %v776 = vmul.f32 %v760, %v760
        %v777 = vmul.f32 %v761, %v761
        %v778 = vmul.f32 %v762, %v762
        %v779 = vmul.f32 %v763, %v763
        %v780 = vmul.f32 %v764, %v764
        %v781 = vmul.f32 %v765, %v765
        %v782 = vmul.f32 %v766, %v766
        %v783 = vmul.f32 %v767, %v767
        %v784 = vmul.f32 %v768, %v768
        %v785 = vmul.f32 %v769, %v769
        %v786 = vmul.f32 %v770, %v770
        %v787 = vmul.f32 %v771, %v771
        %v788 = vmul.f32 %v772, %v772
        %v789 = vsel %vm685, %v773, 0.0
        %790 = vadd.xlane.f32.xlu0 %v789
        %v791 = vpop.xlane.xlu0 %790
        %v792 = vsel %vm685, %v774, 0.0
        %793 = vadd.xlane.f32.xlu0 %v792
        %v794 = vpop.xlane.xlu0 %793
        %v795 = vsel %vm685, %v775, 0.0
        %796 = vadd.xlane.f32.xlu0 %v795
        %v797 = vpop.xlane.xlu0 %796
        %v798 = vsel %vm685, %v776, 0.0
        %799 = vadd.xlane.f32.xlu0 %v798
        %v800 = vpop.xlane.xlu0 %799
        %v801 = vsel %vm685, %v777, 0.0
        %802 = vadd.xlane.f32.xlu0 %v801
        %v803 = vpop.xlane.xlu0 %802
        %v804 = vsel %vm685, %v778, 0.0
        %805 = vadd.xlane.f32.xlu0 %v804
        %v806 = vpop.xlane.xlu0 %805
        %v807 = vsel %vm685, %v779, 0.0
        %808 = vadd.xlane.f32.xlu0 %v807
        %v809 = vpop.xlane.xlu0 %808
        %v810 = vsel %vm685, %v780, 0.0
        %811 = vadd.xlane.f32.xlu0 %v810
        %v812 = vpop.xlane.xlu0 %811
        %v813 = vsel %vm685, %v781, 0.0
        %814 = vadd.xlane.f32.xlu0 %v813
        %v815 = vpop.xlane.xlu0 %814
        %v816 = vsel %vm685, %v782, 0.0
        %817 = vadd.xlane.f32.xlu0 %v816
        %v818 = vpop.xlane.xlu0 %817
        %v819 = vsel %vm685, %v783, 0.0
        %820 = vadd.xlane.f32.xlu0 %v819
        %v821 = vpop.xlane.xlu0 %820
        %v822 = vsel %vm685, %v784, 0.0
        %823 = vadd.xlane.f32.xlu0 %v822
        %v824 = vpop.xlane.xlu0 %823
        %v825 = vsel %vm685, %v785, 0.0
        %826 = vadd.xlane.f32.xlu0 %v825
        %v827 = vpop.xlane.xlu0 %826
        %v828 = vsel %vm685, %v786, 0.0
        %829 = vadd.xlane.f32.xlu0 %v828
        %v830 = vpop.xlane.xlu0 %829
        %v831 = vsel %vm685, %v787, 0.0
        %832 = vadd.xlane.f32.xlu0 %v831
        %v833 = vpop.xlane.xlu0 %832
        %v834 = vsel %vm685, %v788, 0.0
        %835 = vadd.xlane.f32.xlu0 %v834
        %v836 = vpop.xlane.xlu0 %835
        %v837 = vmul.f32 %v791, %v740
        %v838 = vmul.f32 %v794, %v740
        %v839 = vmul.f32 %v797, %v740
        %v840 = vmul.f32 %v800, %v740
        %v841 = vmul.f32 %v803, %v740
        %v842 = vmul.f32 %v806, %v740
        %v843 = vmul.f32 %v809, %v740
        %v844 = vmul.f32 %v812, %v740
        %v845 = vmul.f32 %v815, %v740
        %v846 = vmul.f32 %v818, %v740
        %v847 = vmul.f32 %v821, %v740
        %v848 = vmul.f32 %v824, %v740
        %v849 = vmul.f32 %v827, %v740
        %v850 = vmul.f32 %v830, %v740
        %v851 = vmul.f32 %v833, %v740
        %v852 = vmul.f32 %v836, %v740
        %v853 = vadd.f32 %v837, 1e-05
        %v854 = vadd.f32 %v838, 1e-05
        %v855 = vadd.f32 %v839, 1e-05
        %v856 = vadd.f32 %v840, 1e-05
        %v857 = vadd.f32 %v841, 1e-05
        %v858 = vadd.f32 %v842, 1e-05
        %v859 = vadd.f32 %v843, 1e-05
        %v860 = vadd.f32 %v844, 1e-05
        %v861 = vadd.f32 %v845, 1e-05
        %v862 = vadd.f32 %v846, 1e-05
        %v863 = vadd.f32 %v847, 1e-05
        %v864 = vadd.f32 %v848, 1e-05
        %v865 = vadd.f32 %v849, 1e-05
        %v866 = vadd.f32 %v850, 1e-05
        %v867 = vadd.f32 %v851, 1e-05
        %v868 = vadd.f32 %v852, 1e-05
        %v869 = vrsqrt.pop %v853
        %v870 = vmul.f32 %v869, %v853
        %v871 = vmul.f32 %v870, %v869
        %v872 = vmul.f32 0.5, %v871
        %v873 = vsub.f32 1.5, %v872
        %v874 = vmul.f32 %v869, %v873
        %vm875 = vweird.f32 %v853
        %vm876 = vweird.f32 %v869
        %vm877 = vmor %vm875, %vm876
        %v878 = vsel %vm877, %v869, %v874
        %v879 = vrsqrt.pop %v854
        %v880 = vmul.f32 %v879, %v854
        %v881 = vmul.f32 %v880, %v879
        %v882 = vmul.f32 0.5, %v881
        %v883 = vsub.f32 1.5, %v882
        %v884 = vmul.f32 %v879, %v883
        %vm885 = vweird.f32 %v854
        %vm886 = vweird.f32 %v879
        %vm887 = vmor %vm885, %vm886
        %v888 = vsel %vm887, %v879, %v884
        %v889 = vrsqrt.pop %v855
        %v890 = vmul.f32 %v889, %v855
        %v891 = vmul.f32 %v890, %v889
        %v892 = vmul.f32 0.5, %v891
        %v893 = vsub.f32 1.5, %v892
        %v894 = vmul.f32 %v889, %v893
        %vm895 = vweird.f32 %v855
        %vm896 = vweird.f32 %v889
        %vm897 = vmor %vm895, %vm896
        %v898 = vsel %vm897, %v889, %v894
        %v899 = vrsqrt.pop %v856
        %v900 = vmul.f32 %v899, %v856
        %v901 = vmul.f32 %v900, %v899
        %v902 = vmul.f32 0.5, %v901
        %v903 = vsub.f32 1.5, %v902
        %v904 = vmul.f32 %v899, %v903
        %vm905 = vweird.f32 %v856
        %vm906 = vweird.f32 %v899
        %vm907 = vmor %vm905, %vm906
        %v908 = vsel %vm907, %v899, %v904
        %v909 = vrsqrt.pop %v857
        %v910 = vmul.f32 %v909, %v857
        %v911 = vmul.f32 %v910, %v909
        %v912 = vmul.f32 0.5, %v911
        %v913 = vsub.f32 1.5, %v912
        %v914 = vmul.f32 %v909, %v913
        %vm915 = vweird.f32 %v857
        %vm916 = vweird.f32 %v909
        %vm917 = vmor %vm915, %vm916
        %v918 = vsel %vm917, %v909, %v914
        %v919 = vrsqrt.pop %v858
        %v920 = vmul.f32 %v919, %v858
        %v921 = vmul.f32 %v920, %v919
        %v922 = vmul.f32 0.5, %v921
        %v923 = vsub.f32 1.5, %v922
        %v924 = vmul.f32 %v919, %v923
        %vm925 = vweird.f32 %v858
        %vm926 = vweird.f32 %v919
        %vm927 = vmor %vm925, %vm926
        %v928 = vsel %vm927, %v919, %v924
        %v929 = vrsqrt.pop %v859
        %v930 = vmul.f32 %v929, %v859
        %v931 = vmul.f32 %v930, %v929
        %v932 = vmul.f32 0.5, %v931
        %v933 = vsub.f32 1.5, %v932
        %v934 = vmul.f32 %v929, %v933
        %vm935 = vweird.f32 %v859
        %vm936 = vweird.f32 %v929
        %vm937 = vmor %vm935, %vm936
        %v938 = vsel %vm937, %v929, %v934
        %v939 = vrsqrt.pop %v860
        %v940 = vmul.f32 %v939, %v860
        %v941 = vmul.f32 %v940, %v939
        %v942 = vmul.f32 0.5, %v941
        %v943 = vsub.f32 1.5, %v942
        %v944 = vmul.f32 %v939, %v943
        %vm945 = vweird.f32 %v860
        %vm946 = vweird.f32 %v939
        %vm947 = vmor %vm945, %vm946
        %v948 = vsel %vm947, %v939, %v944
        %v949 = vrsqrt.pop %v861
        %v950 = vmul.f32 %v949, %v861
        %v951 = vmul.f32 %v950, %v949
        %v952 = vmul.f32 0.5, %v951
        %v953 = vsub.f32 1.5, %v952
        %v954 = vmul.f32 %v949, %v953
        %vm955 = vweird.f32 %v861
        %vm956 = vweird.f32 %v949
        %vm957 = vmor %vm955, %vm956
        %v958 = vsel %vm957, %v949, %v954
        %v959 = vrsqrt.pop %v862
        %v960 = vmul.f32 %v959, %v862
        %v961 = vmul.f32 %v960, %v959
        %v962 = vmul.f32 0.5, %v961
        %v963 = vsub.f32 1.5, %v962
        %v964 = vmul.f32 %v959, %v963
        %vm965 = vweird.f32 %v862
        %vm966 = vweird.f32 %v959
        %vm967 = vmor %vm965, %vm966
        %v968 = vsel %vm967, %v959, %v964
        %v969 = vrsqrt.pop %v863
        %v970 = vmul.f32 %v969, %v863
        %v971 = vmul.f32 %v970, %v969
        %v972 = vmul.f32 0.5, %v971
        %v973 = vsub.f32 1.5, %v972
        %v974 = vmul.f32 %v969, %v973
        %vm975 = vweird.f32 %v863
        %vm976 = vweird.f32 %v969
        %vm977 = vmor %vm975, %vm976
        %v978 = vsel %vm977, %v969, %v974
        %v979 = vrsqrt.pop %v864
        %v980 = vmul.f32 %v979, %v864
        %v981 = vmul.f32 %v980, %v979
        %v982 = vmul.f32 0.5, %v981
        %v983 = vsub.f32 1.5, %v982
        %v984 = vmul.f32 %v979, %v983
        %vm985 = vweird.f32 %v864
        %vm986 = vweird.f32 %v979
        %vm987 = vmor %vm985, %vm986
        %v988 = vsel %vm987, %v979, %v984
        %v989 = vrsqrt.pop %v865
        %v990 = vmul.f32 %v989, %v865
        %v991 = vmul.f32 %v990, %v989
        %v992 = vmul.f32 0.5, %v991
        %v993 = vsub.f32 1.5, %v992
        %v994 = vmul.f32 %v989, %v993
        %vm995 = vweird.f32 %v865
        %vm996 = vweird.f32 %v989
        %vm997 = vmor %vm995, %vm996
        %v998 = vsel %vm997, %v989, %v994
        %v999 = vrsqrt.pop %v866
        %v1000 = vmul.f32 %v999, %v866
        %v1001 = vmul.f32 %v1000, %v999
        %v1002 = vmul.f32 0.5, %v1001
        %v1003 = vsub.f32 1.5, %v1002
        %v1004 = vmul.f32 %v999, %v1003
        %vm1005 = vweird.f32 %v866
        %vm1006 = vweird.f32 %v999
        %vm1007 = vmor %vm1005, %vm1006
        %v1008 = vsel %vm1007, %v999, %v1004
        %v1009 = vrsqrt.pop %v867
        %v1010 = vmul.f32 %v1009, %v867
        %v1011 = vmul.f32 %v1010, %v1009
        %v1012 = vmul.f32 0.5, %v1011
        %v1013 = vsub.f32 1.5, %v1012
        %v1014 = vmul.f32 %v1009, %v1013
        %vm1015 = vweird.f32 %v867
        %vm1016 = vweird.f32 %v1009
        %vm1017 = vmor %vm1015, %vm1016
        %v1018 = vsel %vm1017, %v1009, %v1014
        %v1019 = vrsqrt.pop %v868
        %v1020 = vmul.f32 %v1019, %v868
        %v1021 = vmul.f32 %v1020, %v1019
        %v1022 = vmul.f32 0.5, %v1021
        %v1023 = vsub.f32 1.5, %v1022
        %v1024 = vmul.f32 %v1019, %v1023
        %vm1025 = vweird.f32 %v868
        %vm1026 = vweird.f32 %v1019
        %vm1027 = vmor %vm1025, %vm1026
        %v1028 = vsel %vm1027, %v1019, %v1024
        %v1030 = vperm.slane %v683, 0
        %v1032 = vmul.f32 %v878, %v1030
        %v1033 = vmul.f32 %v888, %v1030
        %v1034 = vmul.f32 %v898, %v1030
        %v1035 = vmul.f32 %v908, %v1030
        %v1036 = vmul.f32 %v918, %v1030
        %v1037 = vmul.f32 %v928, %v1030
        %v1038 = vmul.f32 %v938, %v1030
        %v1039 = vmul.f32 %v948, %v1030
        %v1040 = vmul.f32 %v958, %v1030
        %v1041 = vmul.f32 %v968, %v1030
        %v1042 = vmul.f32 %v978, %v1030
        %v1043 = vmul.f32 %v988, %v1030
        %v1044 = vmul.f32 %v998, %v1030
        %v1045 = vmul.f32 %v1008, %v1030
        %v1046 = vmul.f32 %v1018, %v1030
        %v1047 = vmul.f32 %v1028, %v1030
        %v1048 = vmul.f32 %v757, %v1032
        %v1049 = vmul.f32 %v758, %v1033
        %v1050 = vmul.f32 %v759, %v1034
        %v1051 = vmul.f32 %v760, %v1035
        %v1052 = vmul.f32 %v761, %v1036
        %v1053 = vmul.f32 %v762, %v1037
        %v1054 = vmul.f32 %v763, %v1038
        %v1055 = vmul.f32 %v764, %v1039
        %v1056 = vmul.f32 %v765, %v1040
        %v1057 = vmul.f32 %v766, %v1041
        %v1058 = vmul.f32 %v767, %v1042
        %v1059 = vmul.f32 %v768, %v1043
        %v1060 = vmul.f32 %v769, %v1044
        %v1061 = vmul.f32 %v770, %v1045
        %v1062 = vmul.f32 %v771, %v1046
        %v1063 = vmul.f32 %v772, %v1047
        %v1065 = vperm.slane %v684, 0
        %v1067 = vadd.f32 %v1048, %v1065
        %v1068 = vadd.f32 %v1049, %v1065
        %v1069 = vadd.f32 %v1050, %v1065
        %v1070 = vadd.f32 %v1051, %v1065
        %v1071 = vadd.f32 %v1052, %v1065
        %v1072 = vadd.f32 %v1053, %v1065
        %v1073 = vadd.f32 %v1054, %v1065
        %v1074 = vadd.f32 %v1055, %v1065
        %v1075 = vadd.f32 %v1056, %v1065
        %v1076 = vadd.f32 %v1057, %v1065
        %v1077 = vadd.f32 %v1058, %v1065
        %v1078 = vadd.f32 %v1059, %v1065
        %v1079 = vadd.f32 %v1060, %v1065
        %v1080 = vadd.f32 %v1061, %v1065
        %v1081 = vadd.f32 %v1062, %v1065
        %v1082 = vadd.f32 %v1063, %v1065
        %v1083 = vld [vmem:[%s6] sm:$0xff]
        %v1084 = vld [vmem:[%s6 + $0x8] sm:$0xff]
        %v1085 = vld [vmem:[%s6 + $0x10] sm:$0xff]
        %v1086 = vld [vmem:[%s6 + $0x18] sm:$0xff]
        %v1087 = vld [vmem:[%s7] sm:$0x1]
        %v1089 = vperm.slane %v1087, 0
        %v1092 = vsel %vm685, %v1067, 0
        %v1095 = vsel %vm685, %v1068, 0
        %v1098 = vsel %vm685, %v1069, 0
        %v1101 = vsel %vm685, %v1070, 0
        %v1104 = vsel %vm685, %v1071, 0
        %v1107 = vsel %vm685, %v1072, 0
        %v1110 = vsel %vm685, %v1073, 0
        %v1113 = vsel %vm685, %v1074, 0
        %v1116 = vsel %vm685, %v1075, 0
        %v1119 = vsel %vm685, %v1076, 0
        %v1122 = vsel %vm685, %v1077, 0
        %v1125 = vsel %vm685, %v1078, 0
        %v1128 = vsel %vm685, %v1079, 0
        %v1131 = vsel %vm685, %v1080, 0
        %v1134 = vsel %vm685, %v1081, 0
        %v1137 = vsel %vm685, %v1082, 0
        %1139 = vmatpush.msra.mxu0 0.0
        %1140 = vmatpush.msra.mxu0 0.0
        %1141 = vmatpush.msra.mxu0 0.0
        %1142 = vmatpush.msra.mxu0 0.0
        %1143 = vmatpush.msra.mxu0 0.0
        %1144 = vmatpush.msra.mxu0 0.0
        %1145 = vmatpush.msra.mxu0 0.0
        %1146 = vmatpush.msra.mxu0 0.0
        %1147 = vmatpush.msra.mxu0 0.0
        %1148 = vmatpush.msra.mxu0 0.0
        %1149 = vmatpush.msra.mxu0 0.0
        %1150 = vmatpush.msra.mxu0 0.0
        %1151 = vmatpush.msra.mxu0 %v1086
        %1152 = vmatpush.msra.mxu0 %v1085
        %1153 = vmatpush.msra.mxu0 %v1084
        %1154 = vmatpush.msra.mxu0 %v1083
        %1155 = vmatmul.f32.gmra.mxu0 %v1092
        %v1156 = vpop.f32.mrf.mxu0
        %v1157 = vadd.f32 %v1089, %v1156
        %1158 = vmatmul.f32.gmra.mxu0 %v1095
        %v1159 = vpop.f32.mrf.mxu0
        %v1160 = vadd.f32 %v1089, %v1159
        %1161 = vmatmul.f32.gmra.mxu0 %v1098
        %v1162 = vpop.f32.mrf.mxu0
        %v1163 = vadd.f32 %v1089, %v1162
        %1164 = vmatmul.f32.gmra.mxu0 %v1101
        %v1165 = vpop.f32.mrf.mxu0
        %v1166 = vadd.f32 %v1089, %v1165
        %1167 = vmatmul.f32.gmra.mxu0 %v1104
        %v1168 = vpop.f32.mrf.mxu0
        %v1169 = vadd.f32 %v1089, %v1168
        %1170 = vmatmul.f32.gmra.mxu0 %v1107
        %v1171 = vpop.f32.mrf.mxu0
        %v1172 = vadd.f32 %v1089, %v1171
        %1173 = vmatmul.f32.gmra.mxu0 %v1110
        %v1174 = vpop.f32.mrf.mxu0
        %v1175 = vadd.f32 %v1089, %v1174
        %1176 = vmatmul.f32.gmra.mxu0 %v1113
        %v1177 = vpop.f32.mrf.mxu0
        %v1178 = vadd.f32 %v1089, %v1177
        %1179 = vmatmul.f32.gmra.mxu0 %v1116
        %v1180 = vpop.f32.mrf.mxu0
        %v1181 = vadd.f32 %v1089, %v1180
        %1182 = vmatmul.f32.gmra.mxu0 %v1119
        %v1183 = vpop.f32.mrf.mxu0
        %v1184 = vadd.f32 %v1089, %v1183
        %1185 = vmatmul.f32.gmra.mxu0 %v1122
        %v1186 = vpop.f32.mrf.mxu0
        %v1187 = vadd.f32 %v1089, %v1186
        %1188 = vmatmul.f32.gmra.mxu0 %v1125
        %v1189 = vpop.f32.mrf.mxu0
        %v1190 = vadd.f32 %v1089, %v1189
        %1191 = vmatmul.f32.gmra.mxu0 %v1128
        %v1192 = vpop.f32.mrf.mxu0
        %v1193 = vadd.f32 %v1089, %v1192
        %1194 = vmatmul.f32.gmra.mxu0 %v1131
        %v1195 = vpop.f32.mrf.mxu0
        %v1196 = vadd.f32 %v1089, %v1195
        %1197 = vmatmul.f32.gmra.mxu0 %v1134
        %v1198 = vpop.f32.mrf.mxu0
        %v1199 = vadd.f32 %v1089, %v1198
        %1200 = vmatmul.f32.gmra.mxu0 %v1137
        %v1201 = vpop.f32.mrf.mxu0
        %v1202 = vadd.f32 %v1089, %v1201
        %1203 = vdwg.mxu0
        %v1204 = vmax.f32 %v1157, 0.0
        %v1205 = vmax.f32 %v1160, 0.0
        %v1206 = vmax.f32 %v1163, 0.0
        %v1207 = vmax.f32 %v1166, 0.0
        %v1208 = vmax.f32 %v1169, 0.0
        %v1209 = vmax.f32 %v1172, 0.0
        %v1210 = vmax.f32 %v1175, 0.0
        %v1211 = vmax.f32 %v1178, 0.0
        %v1212 = vmax.f32 %v1181, 0.0
        %v1213 = vmax.f32 %v1184, 0.0
        %v1214 = vmax.f32 %v1187, 0.0
        %v1215 = vmax.f32 %v1190, 0.0
        %v1216 = vmax.f32 %v1193, 0.0
        %v1217 = vmax.f32 %v1196, 0.0
        %v1218 = vmax.f32 %v1199, 0.0
        %v1219 = vmax.f32 %v1202, 0.0
        %v1220 = vld [vmem:[%s8] sm:$0x1]
        %v1221 = vld [vmem:[%s9] sm:$0x1]
        %vm1222 = vcmask 130048
        %v1223 = vsel %vm1222, %v1204, 0.0
        %1224 = vadd.xlane.f32.xlu0 %v1223
        %v1225 = vpop.xlane.xlu0 %1224
        %v1226 = vsel %vm1222, %v1205, 0.0
        %1227 = vadd.xlane.f32.xlu0 %v1226
        %v1228 = vpop.xlane.xlu0 %1227
        %v1229 = vsel %vm1222, %v1206, 0.0
        %1230 = vadd.xlane.f32.xlu0 %v1229
        %v1231 = vpop.xlane.xlu0 %1230
        %v1232 = vsel %vm1222, %v1207, 0.0
        %1233 = vadd.xlane.f32.xlu0 %v1232
        %v1234 = vpop.xlane.xlu0 %1233
        %v1235 = vsel %vm1222, %v1208, 0.0
        %1236 = vadd.xlane.f32.xlu0 %v1235
        %v1237 = vpop.xlane.xlu0 %1236
        %v1238 = vsel %vm1222, %v1209, 0.0
        %1239 = vadd.xlane.f32.xlu0 %v1238
        %v1240 = vpop.xlane.xlu0 %1239
        %v1241 = vsel %vm1222, %v1210, 0.0
        %1242 = vadd.xlane.f32.xlu0 %v1241
        %v1243 = vpop.xlane.xlu0 %1242
        %v1244 = vsel %vm1222, %v1211, 0.0
        %1245 = vadd.xlane.f32.xlu0 %v1244
        %v1246 = vpop.xlane.xlu0 %1245
        %v1247 = vsel %vm1222, %v1212, 0.0
        %1248 = vadd.xlane.f32.xlu0 %v1247
        %v1249 = vpop.xlane.xlu0 %1248
        %v1250 = vsel %vm1222, %v1213, 0.0
        %1251 = vadd.xlane.f32.xlu0 %v1250
        %v1252 = vpop.xlane.xlu0 %1251
        %v1253 = vsel %vm1222, %v1214, 0.0
        %1254 = vadd.xlane.f32.xlu0 %v1253
        %v1255 = vpop.xlane.xlu0 %1254
        %v1256 = vsel %vm1222, %v1215, 0.0
        %1257 = vadd.xlane.f32.xlu0 %v1256
        %v1258 = vpop.xlane.xlu0 %1257
        %v1259 = vsel %vm1222, %v1216, 0.0
        %1260 = vadd.xlane.f32.xlu0 %v1259
        %v1261 = vpop.xlane.xlu0 %1260
        %v1262 = vsel %vm1222, %v1217, 0.0
        %1263 = vadd.xlane.f32.xlu0 %v1262
        %v1264 = vpop.xlane.xlu0 %1263
        %v1265 = vsel %vm1222, %v1218, 0.0
        %1266 = vadd.xlane.f32.xlu0 %v1265
        %v1267 = vpop.xlane.xlu0 %1266
        %v1268 = vsel %vm1222, %v1219, 0.0
        %1269 = vadd.xlane.f32.xlu0 %v1268
        %v1270 = vpop.xlane.xlu0 %1269
        %v1271 = vrcp.pop 16.0
        %v1272 = vmul.f32 16.0, %v1271
        %v1273 = vsub.f32 1.0, %v1272
        %v1274 = vmul.f32 %v1271, %v1273
        %v1275 = vadd.f32 %v1271, %v1274
        %vm1276 = vweird.f32 %v1271
        %v1277 = vsel %vm1276, %v1271, %v1275
        %v1278 = vmul.f32 %v1225, %v1277
        %v1279 = vmul.f32 %v1228, %v1277
        %v1280 = vmul.f32 %v1231, %v1277
        %v1281 = vmul.f32 %v1234, %v1277
        %v1282 = vmul.f32 %v1237, %v1277
        %v1283 = vmul.f32 %v1240, %v1277
        %v1284 = vmul.f32 %v1243, %v1277
        %v1285 = vmul.f32 %v1246, %v1277
        %v1286 = vmul.f32 %v1249, %v1277
        %v1287 = vmul.f32 %v1252, %v1277
        %v1288 = vmul.f32 %v1255, %v1277
        %v1289 = vmul.f32 %v1258, %v1277
        %v1290 = vmul.f32 %v1261, %v1277
        %v1291 = vmul.f32 %v1264, %v1277
        %v1292 = vmul.f32 %v1267, %v1277
        %v1293 = vmul.f32 %v1270, %v1277
        %v1294 = vsub.f32 %v1204, %v1278
        %v1295 = vsub.f32 %v1205, %v1279
        %v1296 = vsub.f32 %v1206, %v1280
        %v1297 = vsub.f32 %v1207, %v1281
        %v1298 = vsub.f32 %v1208, %v1282
        %v1299 = vsub.f32 %v1209, %v1283
        %v1300 = vsub.f32 %v1210, %v1284
        %v1301 = vsub.f32 %v1211, %v1285
        %v1302 = vsub.f32 %v1212, %v1286
        %v1303 = vsub.f32 %v1213, %v1287
        %v1304 = vsub.f32 %v1214, %v1288
        %v1305 = vsub.f32 %v1215, %v1289
        %v1306 = vsub.f32 %v1216, %v1290
        %v1307 = vsub.f32 %v1217, %v1291
        %v1308 = vsub.f32 %v1218, %v1292
        %v1309 = vsub.f32 %v1219, %v1293
        %v1310 = vmul.f32 %v1294, %v1294
        %v1311 = vmul.f32 %v1295, %v1295
        %v1312 = vmul.f32 %v1296, %v1296
        %v1313 = vmul.f32 %v1297, %v1297
        %v1314 = vmul.f32 %v1298, %v1298
        %v1315 = vmul.f32 %v1299, %v1299
        %v1316 = vmul.f32 %v1300, %v1300
        %v1317 = vmul.f32 %v1301, %v1301
        %v1318 = vmul.f32 %v1302, %v1302
        %v1319 = vmul.f32 %v1303, %v1303
        %v1320 = vmul.f32 %v1304, %v1304
        %v1321 = vmul.f32 %v1305, %v1305
        %v1322 = vmul.f32 %v1306, %v1306
        %v1323 = vmul.f32 %v1307, %v1307
        %v1324 = vmul.f32 %v1308, %v1308
        %v1325 = vmul.f32 %v1309, %v1309
        %v1326 = vsel %vm1222, %v1310, 0.0
        %1327 = vadd.xlane.f32.xlu0 %v1326
        %v1328 = vpop.xlane.xlu0 %1327
        %v1329 = vsel %vm1222, %v1311, 0.0
        %1330 = vadd.xlane.f32.xlu0 %v1329
        %v1331 = vpop.xlane.xlu0 %1330
        %v1332 = vsel %vm1222, %v1312, 0.0
        %1333 = vadd.xlane.f32.xlu0 %v1332
        %v1334 = vpop.xlane.xlu0 %1333
        %v1335 = vsel %vm1222, %v1313, 0.0
        %1336 = vadd.xlane.f32.xlu0 %v1335
        %v1337 = vpop.xlane.xlu0 %1336
        %v1338 = vsel %vm1222, %v1314, 0.0
        %1339 = vadd.xlane.f32.xlu0 %v1338
        %v1340 = vpop.xlane.xlu0 %1339
        %v1341 = vsel %vm1222, %v1315, 0.0
        %1342 = vadd.xlane.f32.xlu0 %v1341
        %v1343 = vpop.xlane.xlu0 %1342
        %v1344 = vsel %vm1222, %v1316, 0.0
        %1345 = vadd.xlane.f32.xlu0 %v1344
        %v1346 = vpop.xlane.xlu0 %1345
        %v1347 = vsel %vm1222, %v1317, 0.0
        %1348 = vadd.xlane.f32.xlu0 %v1347
        %v1349 = vpop.xlane.xlu0 %1348
        %v1350 = vsel %vm1222, %v1318, 0.0
        %1351 = vadd.xlane.f32.xlu0 %v1350
        %v1352 = vpop.xlane.xlu0 %1351
        %v1353 = vsel %vm1222, %v1319, 0.0
        %1354 = vadd.xlane.f32.xlu0 %v1353
        %v1355 = vpop.xlane.xlu0 %1354
        %v1356 = vsel %vm1222, %v1320, 0.0
        %1357 = vadd.xlane.f32.xlu0 %v1356
        %v1358 = vpop.xlane.xlu0 %1357
        %v1359 = vsel %vm1222, %v1321, 0.0
        %1360 = vadd.xlane.f32.xlu0 %v1359
        %v1361 = vpop.xlane.xlu0 %1360
        %v1362 = vsel %vm1222, %v1322, 0.0
        %1363 = vadd.xlane.f32.xlu0 %v1362
        %v1364 = vpop.xlane.xlu0 %1363
        %v1365 = vsel %vm1222, %v1323, 0.0
        %1366 = vadd.xlane.f32.xlu0 %v1365
        %v1367 = vpop.xlane.xlu0 %1366
        %v1368 = vsel %vm1222, %v1324, 0.0
        %1369 = vadd.xlane.f32.xlu0 %v1368
        %v1370 = vpop.xlane.xlu0 %1369
        %v1371 = vsel %vm1222, %v1325, 0.0
        %1372 = vadd.xlane.f32.xlu0 %v1371
        %v1373 = vpop.xlane.xlu0 %1372
        %v1374 = vmul.f32 %v1328, %v1277
        %v1375 = vmul.f32 %v1331, %v1277
        %v1376 = vmul.f32 %v1334, %v1277
        %v1377 = vmul.f32 %v1337, %v1277
        %v1378 = vmul.f32 %v1340, %v1277
        %v1379 = vmul.f32 %v1343, %v1277
        %v1380 = vmul.f32 %v1346, %v1277
        %v1381 = vmul.f32 %v1349, %v1277
        %v1382 = vmul.f32 %v1352, %v1277
        %v1383 = vmul.f32 %v1355, %v1277
        %v1384 = vmul.f32 %v1358, %v1277
        %v1385 = vmul.f32 %v1361, %v1277
        %v1386 = vmul.f32 %v1364, %v1277
        %v1387 = vmul.f32 %v1367, %v1277
        %v1388 = vmul.f32 %v1370, %v1277
        %v1389 = vmul.f32 %v1373, %v1277
        %v1390 = vadd.f32 %v1374, 1e-05
        %v1391 = vadd.f32 %v1375, 1e-05
        %v1392 = vadd.f32 %v1376, 1e-05
        %v1393 = vadd.f32 %v1377, 1e-05
        %v1394 = vadd.f32 %v1378, 1e-05
        %v1395 = vadd.f32 %v1379, 1e-05
        %v1396 = vadd.f32 %v1380, 1e-05
        %v1397 = vadd.f32 %v1381, 1e-05
        %v1398 = vadd.f32 %v1382, 1e-05
        %v1399 = vadd.f32 %v1383, 1e-05
        %v1400 = vadd.f32 %v1384, 1e-05
        %v1401 = vadd.f32 %v1385, 1e-05
        %v1402 = vadd.f32 %v1386, 1e-05
        %v1403 = vadd.f32 %v1387, 1e-05
        %v1404 = vadd.f32 %v1388, 1e-05
        %v1405 = vadd.f32 %v1389, 1e-05
        %v1406 = vrsqrt.pop %v1390
        %v1407 = vmul.f32 %v1406, %v1390
        %v1408 = vmul.f32 %v1407, %v1406
        %v1409 = vmul.f32 0.5, %v1408
        %v1410 = vsub.f32 1.5, %v1409
        %v1411 = vmul.f32 %v1406, %v1410
        %vm1412 = vweird.f32 %v1390
        %vm1413 = vweird.f32 %v1406
        %vm1414 = vmor %vm1412, %vm1413
        %v1415 = vsel %vm1414, %v1406, %v1411
        %v1416 = vrsqrt.pop %v1391
        %v1417 = vmul.f32 %v1416, %v1391
        %v1418 = vmul.f32 %v1417, %v1416
        %v1419 = vmul.f32 0.5, %v1418
        %v1420 = vsub.f32 1.5, %v1419
        %v1421 = vmul.f32 %v1416, %v1420
        %vm1422 = vweird.f32 %v1391
        %vm1423 = vweird.f32 %v1416
        %vm1424 = vmor %vm1422, %vm1423
        %v1425 = vsel %vm1424, %v1416, %v1421
        %v1426 = vrsqrt.pop %v1392
        %v1427 = vmul.f32 %v1426, %v1392
        %v1428 = vmul.f32 %v1427, %v1426
        %v1429 = vmul.f32 0.5, %v1428
        %v1430 = vsub.f32 1.5, %v1429
        %v1431 = vmul.f32 %v1426, %v1430
        %vm1432 = vweird.f32 %v1392
        %vm1433 = vweird.f32 %v1426
        %vm1434 = vmor %vm1432, %vm1433
        %v1435 = vsel %vm1434, %v1426, %v1431
        %v1436 = vrsqrt.pop %v1393
        %v1437 = vmul.f32 %v1436, %v1393
        %v1438 = vmul.f32 %v1437, %v1436
        %v1439 = vmul.f32 0.5, %v1438
        %v1440 = vsub.f32 1.5, %v1439
        %v1441 = vmul.f32 %v1436, %v1440
        %vm1442 = vweird.f32 %v1393
        %vm1443 = vweird.f32 %v1436
        %vm1444 = vmor %vm1442, %vm1443
        %v1445 = vsel %vm1444, %v1436, %v1441
        %v1446 = vrsqrt.pop %v1394
        %v1447 = vmul.f32 %v1446, %v1394
        %v1448 = vmul.f32 %v1447, %v1446
        %v1449 = vmul.f32 0.5, %v1448
        %v1450 = vsub.f32 1.5, %v1449
        %v1451 = vmul.f32 %v1446, %v1450
        %vm1452 = vweird.f32 %v1394
        %vm1453 = vweird.f32 %v1446
        %vm1454 = vmor %vm1452, %vm1453
        %v1455 = vsel %vm1454, %v1446, %v1451
        %v1456 = vrsqrt.pop %v1395
        %v1457 = vmul.f32 %v1456, %v1395
        %v1458 = vmul.f32 %v1457, %v1456
        %v1459 = vmul.f32 0.5, %v1458
        %v1460 = vsub.f32 1.5, %v1459
        %v1461 = vmul.f32 %v1456, %v1460
        %vm1462 = vweird.f32 %v1395
        %vm1463 = vweird.f32 %v1456
        %vm1464 = vmor %vm1462, %vm1463
        %v1465 = vsel %vm1464, %v1456, %v1461
        %v1466 = vrsqrt.pop %v1396
        %v1467 = vmul.f32 %v1466, %v1396
        %v1468 = vmul.f32 %v1467, %v1466
        %v1469 = vmul.f32 0.5, %v1468
        %v1470 = vsub.f32 1.5, %v1469
        %v1471 = vmul.f32 %v1466, %v1470
        %vm1472 = vweird.f32 %v1396
        %vm1473 = vweird.f32 %v1466
        %vm1474 = vmor %vm1472, %vm1473
        %v1475 = vsel %vm1474, %v1466, %v1471
        %v1476 = vrsqrt.pop %v1397
        %v1477 = vmul.f32 %v1476, %v1397
        %v1478 = vmul.f32 %v1477, %v1476
        %v1479 = vmul.f32 0.5, %v1478
        %v1480 = vsub.f32 1.5, %v1479
        %v1481 = vmul.f32 %v1476, %v1480
        %vm1482 = vweird.f32 %v1397
        %vm1483 = vweird.f32 %v1476
        %vm1484 = vmor %vm1482, %vm1483
        %v1485 = vsel %vm1484, %v1476, %v1481
        %v1486 = vrsqrt.pop %v1398
        %v1487 = vmul.f32 %v1486, %v1398
        %v1488 = vmul.f32 %v1487, %v1486
        %v1489 = vmul.f32 0.5, %v1488
        %v1490 = vsub.f32 1.5, %v1489
        %v1491 = vmul.f32 %v1486, %v1490
        %vm1492 = vweird.f32 %v1398
        %vm1493 = vweird.f32 %v1486
        %vm1494 = vmor %vm1492, %vm1493
        %v1495 = vsel %vm1494, %v1486, %v1491
        %v1496 = vrsqrt.pop %v1399
        %v1497 = vmul.f32 %v1496, %v1399
        %v1498 = vmul.f32 %v1497, %v1496
        %v1499 = vmul.f32 0.5, %v1498
        %v1500 = vsub.f32 1.5, %v1499
        %v1501 = vmul.f32 %v1496, %v1500
        %vm1502 = vweird.f32 %v1399
        %vm1503 = vweird.f32 %v1496
        %vm1504 = vmor %vm1502, %vm1503
        %v1505 = vsel %vm1504, %v1496, %v1501
        %v1506 = vrsqrt.pop %v1400
        %v1507 = vmul.f32 %v1506, %v1400
        %v1508 = vmul.f32 %v1507, %v1506
        %v1509 = vmul.f32 0.5, %v1508
        %v1510 = vsub.f32 1.5, %v1509
        %v1511 = vmul.f32 %v1506, %v1510
        %vm1512 = vweird.f32 %v1400
        %vm1513 = vweird.f32 %v1506
        %vm1514 = vmor %vm1512, %vm1513
        %v1515 = vsel %vm1514, %v1506, %v1511
        %v1516 = vrsqrt.pop %v1401
        %v1517 = vmul.f32 %v1516, %v1401
        %v1518 = vmul.f32 %v1517, %v1516
        %v1519 = vmul.f32 0.5, %v1518
        %v1520 = vsub.f32 1.5, %v1519
        %v1521 = vmul.f32 %v1516, %v1520
        %vm1522 = vweird.f32 %v1401
        %vm1523 = vweird.f32 %v1516
        %vm1524 = vmor %vm1522, %vm1523
        %v1525 = vsel %vm1524, %v1516, %v1521
        %v1526 = vrsqrt.pop %v1402
        %v1527 = vmul.f32 %v1526, %v1402
        %v1528 = vmul.f32 %v1527, %v1526
        %v1529 = vmul.f32 0.5, %v1528
        %v1530 = vsub.f32 1.5, %v1529
        %v1531 = vmul.f32 %v1526, %v1530
        %vm1532 = vweird.f32 %v1402
        %vm1533 = vweird.f32 %v1526
        %vm1534 = vmor %vm1532, %vm1533
        %v1535 = vsel %vm1534, %v1526, %v1531
        %v1536 = vrsqrt.pop %v1403
        %v1537 = vmul.f32 %v1536, %v1403
        %v1538 = vmul.f32 %v1537, %v1536
        %v1539 = vmul.f32 0.5, %v1538
        %v1540 = vsub.f32 1.5, %v1539
        %v1541 = vmul.f32 %v1536, %v1540
        %vm1542 = vweird.f32 %v1403
        %vm1543 = vweird.f32 %v1536
        %vm1544 = vmor %vm1542, %vm1543
        %v1545 = vsel %vm1544, %v1536, %v1541
        %v1546 = vrsqrt.pop %v1404
        %v1547 = vmul.f32 %v1546, %v1404
        %v1548 = vmul.f32 %v1547, %v1546
        %v1549 = vmul.f32 0.5, %v1548
        %v1550 = vsub.f32 1.5, %v1549
        %v1551 = vmul.f32 %v1546, %v1550
        %vm1552 = vweird.f32 %v1404
        %vm1553 = vweird.f32 %v1546
        %vm1554 = vmor %vm1552, %vm1553
        %v1555 = vsel %vm1554, %v1546, %v1551
        %v1556 = vrsqrt.pop %v1405
        %v1557 = vmul.f32 %v1556, %v1405
        %v1558 = vmul.f32 %v1557, %v1556
        %v1559 = vmul.f32 0.5, %v1558
        %v1560 = vsub.f32 1.5, %v1559
        %v1561 = vmul.f32 %v1556, %v1560
        %vm1562 = vweird.f32 %v1405
        %vm1563 = vweird.f32 %v1556
        %vm1564 = vmor %vm1562, %vm1563
        %v1565 = vsel %vm1564, %v1556, %v1561
        %v1567 = vperm.slane %v1220, 0
        %v1569 = vmul.f32 %v1415, %v1567
        %v1570 = vmul.f32 %v1425, %v1567
        %v1571 = vmul.f32 %v1435, %v1567
        %v1572 = vmul.f32 %v1445, %v1567
        %v1573 = vmul.f32 %v1455, %v1567
        %v1574 = vmul.f32 %v1465, %v1567
        %v1575 = vmul.f32 %v1475, %v1567
        %v1576 = vmul.f32 %v1485, %v1567
        %v1577 = vmul.f32 %v1495, %v1567
        %v1578 = vmul.f32 %v1505, %v1567
        %v1579 = vmul.f32 %v1515, %v1567
        %v1580 = vmul.f32 %v1525, %v1567
        %v1581 = vmul.f32 %v1535, %v1567
        %v1582 = vmul.f32 %v1545, %v1567
        %v1583 = vmul.f32 %v1555, %v1567
        %v1584 = vmul.f32 %v1565, %v1567
        %v1585 = vmul.f32 %v1294, %v1569
        %v1586 = vmul.f32 %v1295, %v1570
        %v1587 = vmul.f32 %v1296, %v1571
        %v1588 = vmul.f32 %v1297, %v1572
        %v1589 = vmul.f32 %v1298, %v1573
        %v1590 = vmul.f32 %v1299, %v1574
        %v1591 = vmul.f32 %v1300, %v1575
        %v1592 = vmul.f32 %v1301, %v1576
        %v1593 = vmul.f32 %v1302, %v1577
        %v1594 = vmul.f32 %v1303, %v1578
        %v1595 = vmul.f32 %v1304, %v1579
        %v1596 = vmul.f32 %v1305, %v1580
        %v1597 = vmul.f32 %v1306, %v1581
        %v1598 = vmul.f32 %v1307, %v1582
        %v1599 = vmul.f32 %v1308, %v1583
        %v1600 = vmul.f32 %v1309, %v1584
        %v1602 = vperm.slane %v1221, 0
        %v1604 = vadd.f32 %v1585, %v1602
        %v1605 = vadd.f32 %v1586, %v1602
        %v1606 = vadd.f32 %v1587, %v1602
        %v1607 = vadd.f32 %v1588, %v1602
        %v1608 = vadd.f32 %v1589, %v1602
        %v1609 = vadd.f32 %v1590, %v1602
        %v1610 = vadd.f32 %v1591, %v1602
        %v1611 = vadd.f32 %v1592, %v1602
        %v1612 = vadd.f32 %v1593, %v1602
        %v1613 = vadd.f32 %v1594, %v1602
        %v1614 = vadd.f32 %v1595, %v1602
        %v1615 = vadd.f32 %v1596, %v1602
        %v1616 = vadd.f32 %v1597, %v1602
        %v1617 = vadd.f32 %v1598, %v1602
        %v1618 = vadd.f32 %v1599, %v1602
        %v1619 = vadd.f32 %v1600, %v1602
        %v1620 = vld [vmem:[%s10] sm:$0xff]
        %v1621 = vld [vmem:[%s10 + $0x8] sm:$0xff]
        %v1622 = vld [vmem:[%s11] sm:$0x1]
        %v1624 = vperm.slane %v1622, 0
        %v1627 = vsel %vm1222, %v1604, 0
        %v1630 = vsel %vm1222, %v1605, 0
        %v1633 = vsel %vm1222, %v1606, 0
        %v1636 = vsel %vm1222, %v1607, 0
        %v1639 = vsel %vm1222, %v1608, 0
        %v1642 = vsel %vm1222, %v1609, 0
        %v1645 = vsel %vm1222, %v1610, 0
        %v1648 = vsel %vm1222, %v1611, 0
        %v1651 = vsel %vm1222, %v1612, 0
        %v1654 = vsel %vm1222, %v1613, 0
        %v1657 = vsel %vm1222, %v1614, 0
        %v1660 = vsel %vm1222, %v1615, 0
        %v1663 = vsel %vm1222, %v1616, 0
        %v1666 = vsel %vm1222, %v1617, 0
        %v1669 = vsel %vm1222, %v1618, 0
        %v1672 = vsel %vm1222, %v1619, 0
        %1674 = vmatpush.msra.mxu0 0.0
        %1675 = vmatpush.msra.mxu0 0.0
        %1676 = vmatpush.msra.mxu0 0.0
        %1677 = vmatpush.msra.mxu0 0.0
        %1678 = vmatpush.msra.mxu0 0.0
        %1679 = vmatpush.msra.mxu0 0.0
        %1680 = vmatpush.msra.mxu0 0.0
        %1681 = vmatpush.msra.mxu0 0.0
        %1682 = vmatpush.msra.mxu0 0.0
        %1683 = vmatpush.msra.mxu0 0.0
        %1684 = vmatpush.msra.mxu0 0.0
        %1685 = vmatpush.msra.mxu0 0.0
        %1686 = vmatpush.msra.mxu0 0.0
        %1687 = vmatpush.msra.mxu0 0.0
        %1688 = vmatpush.msra.mxu0 %v1621
        %1689 = vmatpush.msra.mxu0 %v1620
        %1690 = vmatmul.f32.gmra.mxu0 %v1627
        %v1691 = vpop.f32.mrf.mxu0
        %v1692 = vadd.f32 %v1624, %v1691
        %1693 = vmatmul.f32.gmra.mxu0 %v1630
        %v1694 = vpop.f32.mrf.mxu0
        %v1695 = vadd.f32 %v1624, %v1694
        %1696 = vmatmul.f32.gmra.mxu0 %v1633
        %v1697 = vpop.f32.mrf.mxu0
        %v1698 = vadd.f32 %v1624, %v1697
        %1699 = vmatmul.f32.gmra.mxu0 %v1636
        %v1700 = vpop.f32.mrf.mxu0
        %v1701 = vadd.f32 %v1624, %v1700
        %1702 = vmatmul.f32.gmra.mxu0 %v1639
        %v1703 = vpop.f32.mrf.mxu0
        %v1704 = vadd.f32 %v1624, %v1703
        %1705 = vmatmul.f32.gmra.mxu0 %v1642
        %v1706 = vpop.f32.mrf.mxu0
        %v1707 = vadd.f32 %v1624, %v1706
        %1708 = vmatmul.f32.gmra.mxu0 %v1645
        %v1709 = vpop.f32.mrf.mxu0
        %v1710 = vadd.f32 %v1624, %v1709
        %1711 = vmatmul.f32.gmra.mxu0 %v1648
        %v1712 = vpop.f32.mrf.mxu0
        %v1713 = vadd.f32 %v1624, %v1712
        %1714 = vmatmul.f32.gmra.mxu0 %v1651
        %v1715 = vpop.f32.mrf.mxu0
        %v1716 = vadd.f32 %v1624, %v1715
        %1717 = vmatmul.f32.gmra.mxu0 %v1654
        %v1718 = vpop.f32.mrf.mxu0
        %v1719 = vadd.f32 %v1624, %v1718
        %1720 = vmatmul.f32.gmra.mxu0 %v1657
        %v1721 = vpop.f32.mrf.mxu0
        %v1722 = vadd.f32 %v1624, %v1721
        %1723 = vmatmul.f32.gmra.mxu0 %v1660
        %v1724 = vpop.f32.mrf.mxu0
        %v1725 = vadd.f32 %v1624, %v1724
        %1726 = vmatmul.f32.gmra.mxu0 %v1663
        %v1727 = vpop.f32.mrf.mxu0
        %v1728 = vadd.f32 %v1624, %v1727
        %1729 = vmatmul.f32.gmra.mxu0 %v1666
        %v1730 = vpop.f32.mrf.mxu0
        %v1731 = vadd.f32 %v1624, %v1730
        %1732 = vmatmul.f32.gmra.mxu0 %v1669
        %v1733 = vpop.f32.mrf.mxu0
        %v1734 = vadd.f32 %v1624, %v1733
        %1735 = vmatmul.f32.gmra.mxu0 %v1672
        %v1736 = vpop.f32.mrf.mxu0
        %v1737 = vadd.f32 %v1624, %v1736
        %1738 = vdwg.mxu0
        %v1739 = vmax.f32 %v1692, 0.0
        %v1740 = vmax.f32 %v1695, 0.0
        %v1741 = vmax.f32 %v1698, 0.0
        %v1742 = vmax.f32 %v1701, 0.0
        %v1743 = vmax.f32 %v1704, 0.0
        %v1744 = vmax.f32 %v1707, 0.0
        %v1745 = vmax.f32 %v1710, 0.0
        %v1746 = vmax.f32 %v1713, 0.0
        %v1747 = vmax.f32 %v1716, 0.0
        %v1748 = vmax.f32 %v1719, 0.0
        %v1749 = vmax.f32 %v1722, 0.0
        %v1750 = vmax.f32 %v1725, 0.0
        %v1751 = vmax.f32 %v1728, 0.0
        %v1752 = vmax.f32 %v1731, 0.0
        %v1753 = vmax.f32 %v1734, 0.0
        %v1754 = vmax.f32 %v1737, 0.0
        %v1755 = vld [vmem:[%s12] sm:$0x1]
        %v1756 = vld [vmem:[%s13] sm:$0x1]
        %vm1757 = vcmask 64512
        %v1758 = vsel %vm1757, %v1739, 0.0
        %1759 = vadd.xlane.f32.xlu0 %v1758
        %v1760 = vpop.xlane.xlu0 %1759
        %v1761 = vsel %vm1757, %v1740, 0.0
        %1762 = vadd.xlane.f32.xlu0 %v1761
        %v1763 = vpop.xlane.xlu0 %1762
        %v1764 = vsel %vm1757, %v1741, 0.0
        %1765 = vadd.xlane.f32.xlu0 %v1764
        %v1766 = vpop.xlane.xlu0 %1765
        %v1767 = vsel %vm1757, %v1742, 0.0
        %1768 = vadd.xlane.f32.xlu0 %v1767
        %v1769 = vpop.xlane.xlu0 %1768
        %v1770 = vsel %vm1757, %v1743, 0.0
        %1771 = vadd.xlane.f32.xlu0 %v1770
        %v1772 = vpop.xlane.xlu0 %1771
        %v1773 = vsel %vm1757, %v1744, 0.0
        %1774 = vadd.xlane.f32.xlu0 %v1773
        %v1775 = vpop.xlane.xlu0 %1774
        %v1776 = vsel %vm1757, %v1745, 0.0
        %1777 = vadd.xlane.f32.xlu0 %v1776
        %v1778 = vpop.xlane.xlu0 %1777
        %v1779 = vsel %vm1757, %v1746, 0.0
        %1780 = vadd.xlane.f32.xlu0 %v1779
        %v1781 = vpop.xlane.xlu0 %1780
        %v1782 = vsel %vm1757, %v1747, 0.0
        %1783 = vadd.xlane.f32.xlu0 %v1782
        %v1784 = vpop.xlane.xlu0 %1783
        %v1785 = vsel %vm1757, %v1748, 0.0
        %1786 = vadd.xlane.f32.xlu0 %v1785
        %v1787 = vpop.xlane.xlu0 %1786
        %v1788 = vsel %vm1757, %v1749, 0.0
        %1789 = vadd.xlane.f32.xlu0 %v1788
        %v1790 = vpop.xlane.xlu0 %1789
        %v1791 = vsel %vm1757, %v1750, 0.0
        %1792 = vadd.xlane.f32.xlu0 %v1791
        %v1793 = vpop.xlane.xlu0 %1792
        %v1794 = vsel %vm1757, %v1751, 0.0
        %1795 = vadd.xlane.f32.xlu0 %v1794
        %v1796 = vpop.xlane.xlu0 %1795
        %v1797 = vsel %vm1757, %v1752, 0.0
        %1798 = vadd.xlane.f32.xlu0 %v1797
        %v1799 = vpop.xlane.xlu0 %1798
        %v1800 = vsel %vm1757, %v1753, 0.0
        %1801 = vadd.xlane.f32.xlu0 %v1800
        %v1802 = vpop.xlane.xlu0 %1801
        %v1803 = vsel %vm1757, %v1754, 0.0
        %1804 = vadd.xlane.f32.xlu0 %v1803
        %v1805 = vpop.xlane.xlu0 %1804
        %v1806 = vrcp.pop 8.0
        %v1807 = vmul.f32 8.0, %v1806
        %v1808 = vsub.f32 1.0, %v1807
        %v1809 = vmul.f32 %v1806, %v1808
        %v1810 = vadd.f32 %v1806, %v1809
        %vm1811 = vweird.f32 %v1806
        %v1812 = vsel %vm1811, %v1806, %v1810
        %v1813 = vmul.f32 %v1760, %v1812
        %v1814 = vmul.f32 %v1763, %v1812
        %v1815 = vmul.f32 %v1766, %v1812
        %v1816 = vmul.f32 %v1769, %v1812
        %v1817 = vmul.f32 %v1772, %v1812
        %v1818 = vmul.f32 %v1775, %v1812
        %v1819 = vmul.f32 %v1778, %v1812
        %v1820 = vmul.f32 %v1781, %v1812
        %v1821 = vmul.f32 %v1784, %v1812
        %v1822 = vmul.f32 %v1787, %v1812
        %v1823 = vmul.f32 %v1790, %v1812
        %v1824 = vmul.f32 %v1793, %v1812
        %v1825 = vmul.f32 %v1796, %v1812
        %v1826 = vmul.f32 %v1799, %v1812
        %v1827 = vmul.f32 %v1802, %v1812
        %v1828 = vmul.f32 %v1805, %v1812
        %v1829 = vsub.f32 %v1739, %v1813
        %v1830 = vsub.f32 %v1740, %v1814
        %v1831 = vsub.f32 %v1741, %v1815
        %v1832 = vsub.f32 %v1742, %v1816
        %v1833 = vsub.f32 %v1743, %v1817
        %v1834 = vsub.f32 %v1744, %v1818
        %v1835 = vsub.f32 %v1745, %v1819
        %v1836 = vsub.f32 %v1746, %v1820
        %v1837 = vsub.f32 %v1747, %v1821
        %v1838 = vsub.f32 %v1748, %v1822
        %v1839 = vsub.f32 %v1749, %v1823
        %v1840 = vsub.f32 %v1750, %v1824
        %v1841 = vsub.f32 %v1751, %v1825
        %v1842 = vsub.f32 %v1752, %v1826
        %v1843 = vsub.f32 %v1753, %v1827
        %v1844 = vsub.f32 %v1754, %v1828
        %v1845 = vmul.f32 %v1829, %v1829
        %v1846 = vmul.f32 %v1830, %v1830
        %v1847 = vmul.f32 %v1831, %v1831
        %v1848 = vmul.f32 %v1832, %v1832
        %v1849 = vmul.f32 %v1833, %v1833
        %v1850 = vmul.f32 %v1834, %v1834
        %v1851 = vmul.f32 %v1835, %v1835
        %v1852 = vmul.f32 %v1836, %v1836
        %v1853 = vmul.f32 %v1837, %v1837
        %v1854 = vmul.f32 %v1838, %v1838
        %v1855 = vmul.f32 %v1839, %v1839
        %v1856 = vmul.f32 %v1840, %v1840
        %v1857 = vmul.f32 %v1841, %v1841
        %v1858 = vmul.f32 %v1842, %v1842
        %v1859 = vmul.f32 %v1843, %v1843
        %v1860 = vmul.f32 %v1844, %v1844
        %v1861 = vsel %vm1757, %v1845, 0.0
        %1862 = vadd.xlane.f32.xlu0 %v1861
        %v1863 = vpop.xlane.xlu0 %1862
        %v1864 = vsel %vm1757, %v1846, 0.0
        %1865 = vadd.xlane.f32.xlu0 %v1864
        %v1866 = vpop.xlane.xlu0 %1865
        %v1867 = vsel %vm1757, %v1847, 0.0
        %1868 = vadd.xlane.f32.xlu0 %v1867
        %v1869 = vpop.xlane.xlu0 %1868
        %v1870 = vsel %vm1757, %v1848, 0.0
        %1871 = vadd.xlane.f32.xlu0 %v1870
        %v1872 = vpop.xlane.xlu0 %1871
        %v1873 = vsel %vm1757, %v1849, 0.0
        %1874 = vadd.xlane.f32.xlu0 %v1873
        %v1875 = vpop.xlane.xlu0 %1874
        %v1876 = vsel %vm1757, %v1850, 0.0
        %1877 = vadd.xlane.f32.xlu0 %v1876
        %v1878 = vpop.xlane.xlu0 %1877
        %v1879 = vsel %vm1757, %v1851, 0.0
        %1880 = vadd.xlane.f32.xlu0 %v1879
        %v1881 = vpop.xlane.xlu0 %1880
        %v1882 = vsel %vm1757, %v1852, 0.0
        %1883 = vadd.xlane.f32.xlu0 %v1882
        %v1884 = vpop.xlane.xlu0 %1883
        %v1885 = vsel %vm1757, %v1853, 0.0
        %1886 = vadd.xlane.f32.xlu0 %v1885
        %v1887 = vpop.xlane.xlu0 %1886
        %v1888 = vsel %vm1757, %v1854, 0.0
        %1889 = vadd.xlane.f32.xlu0 %v1888
        %v1890 = vpop.xlane.xlu0 %1889
        %v1891 = vsel %vm1757, %v1855, 0.0
        %1892 = vadd.xlane.f32.xlu0 %v1891
        %v1893 = vpop.xlane.xlu0 %1892
        %v1894 = vsel %vm1757, %v1856, 0.0
        %1895 = vadd.xlane.f32.xlu0 %v1894
        %v1896 = vpop.xlane.xlu0 %1895
        %v1897 = vsel %vm1757, %v1857, 0.0
        %1898 = vadd.xlane.f32.xlu0 %v1897
        %v1899 = vpop.xlane.xlu0 %1898
        %v1900 = vsel %vm1757, %v1858, 0.0
        %1901 = vadd.xlane.f32.xlu0 %v1900
        %v1902 = vpop.xlane.xlu0 %1901
        %v1903 = vsel %vm1757, %v1859, 0.0
        %1904 = vadd.xlane.f32.xlu0 %v1903
        %v1905 = vpop.xlane.xlu0 %1904
        %v1906 = vsel %vm1757, %v1860, 0.0
        %1907 = vadd.xlane.f32.xlu0 %v1906
        %v1908 = vpop.xlane.xlu0 %1907
        %v1909 = vmul.f32 %v1863, %v1812
        %v1910 = vmul.f32 %v1866, %v1812
        %v1911 = vmul.f32 %v1869, %v1812
        %v1912 = vmul.f32 %v1872, %v1812
        %v1913 = vmul.f32 %v1875, %v1812
        %v1914 = vmul.f32 %v1878, %v1812
        %v1915 = vmul.f32 %v1881, %v1812
        %v1916 = vmul.f32 %v1884, %v1812
        %v1917 = vmul.f32 %v1887, %v1812
        %v1918 = vmul.f32 %v1890, %v1812
        %v1919 = vmul.f32 %v1893, %v1812
        %v1920 = vmul.f32 %v1896, %v1812
        %v1921 = vmul.f32 %v1899, %v1812
        %v1922 = vmul.f32 %v1902, %v1812
        %v1923 = vmul.f32 %v1905, %v1812
        %v1924 = vmul.f32 %v1908, %v1812
        %v1925 = vadd.f32 %v1909, 1e-05
        %v1926 = vadd.f32 %v1910, 1e-05
        %v1927 = vadd.f32 %v1911, 1e-05
        %v1928 = vadd.f32 %v1912, 1e-05
        %v1929 = vadd.f32 %v1913, 1e-05
        %v1930 = vadd.f32 %v1914, 1e-05
        %v1931 = vadd.f32 %v1915, 1e-05
        %v1932 = vadd.f32 %v1916, 1e-05
        %v1933 = vadd.f32 %v1917, 1e-05
        %v1934 = vadd.f32 %v1918, 1e-05
        %v1935 = vadd.f32 %v1919, 1e-05
        %v1936 = vadd.f32 %v1920, 1e-05
        %v1937 = vadd.f32 %v1921, 1e-05
        %v1938 = vadd.f32 %v1922, 1e-05
        %v1939 = vadd.f32 %v1923, 1e-05
        %v1940 = vadd.f32 %v1924, 1e-05
        %v1941 = vrsqrt.pop %v1925
        %v1942 = vmul.f32 %v1941, %v1925
        %v1943 = vmul.f32 %v1942, %v1941
        %v1944 = vmul.f32 0.5, %v1943
        %v1945 = vsub.f32 1.5, %v1944
        %v1946 = vmul.f32 %v1941, %v1945
        %vm1947 = vweird.f32 %v1925
        %vm1948 = vweird.f32 %v1941
        %vm1949 = vmor %vm1947, %vm1948
        %v1950 = vsel %vm1949, %v1941, %v1946
        %v1951 = vrsqrt.pop %v1926
        %v1952 = vmul.f32 %v1951, %v1926
        %v1953 = vmul.f32 %v1952, %v1951
        %v1954 = vmul.f32 0.5, %v1953
        %v1955 = vsub.f32 1.5, %v1954
        %v1956 = vmul.f32 %v1951, %v1955
        %vm1957 = vweird.f32 %v1926
        %vm1958 = vweird.f32 %v1951
        %vm1959 = vmor %vm1957, %vm1958
        %v1960 = vsel %vm1959, %v1951, %v1956
        %v1961 = vrsqrt.pop %v1927
        %v1962 = vmul.f32 %v1961, %v1927
        %v1963 = vmul.f32 %v1962, %v1961
        %v1964 = vmul.f32 0.5, %v1963
        %v1965 = vsub.f32 1.5, %v1964
        %v1966 = vmul.f32 %v1961, %v1965
        %vm1967 = vweird.f32 %v1927
        %vm1968 = vweird.f32 %v1961
        %vm1969 = vmor %vm1967, %vm1968
        %v1970 = vsel %vm1969, %v1961, %v1966
        %v1971 = vrsqrt.pop %v1928
        %v1972 = vmul.f32 %v1971, %v1928
        %v1973 = vmul.f32 %v1972, %v1971
        %v1974 = vmul.f32 0.5, %v1973
        %v1975 = vsub.f32 1.5, %v1974
        %v1976 = vmul.f32 %v1971, %v1975
        %vm1977 = vweird.f32 %v1928
        %vm1978 = vweird.f32 %v1971
        %vm1979 = vmor %vm1977, %vm1978
        %v1980 = vsel %vm1979, %v1971, %v1976
        %v1981 = vrsqrt.pop %v1929
        %v1982 = vmul.f32 %v1981, %v1929
        %v1983 = vmul.f32 %v1982, %v1981
        %v1984 = vmul.f32 0.5, %v1983
        %v1985 = vsub.f32 1.5, %v1984
        %v1986 = vmul.f32 %v1981, %v1985
        %vm1987 = vweird.f32 %v1929
        %vm1988 = vweird.f32 %v1981
        %vm1989 = vmor %vm1987, %vm1988
        %v1990 = vsel %vm1989, %v1981, %v1986
        %v1991 = vrsqrt.pop %v1930
        %v1992 = vmul.f32 %v1991, %v1930
        %v1993 = vmul.f32 %v1992, %v1991
        %v1994 = vmul.f32 0.5, %v1993
        %v1995 = vsub.f32 1.5, %v1994
        %v1996 = vmul.f32 %v1991, %v1995
        %vm1997 = vweird.f32 %v1930
        %vm1998 = vweird.f32 %v1991
        %vm1999 = vmor %vm1997, %vm1998
        %v2000 = vsel %vm1999, %v1991, %v1996
        %v2001 = vrsqrt.pop %v1931
        %v2002 = vmul.f32 %v2001, %v1931
        %v2003 = vmul.f32 %v2002, %v2001
        %v2004 = vmul.f32 0.5, %v2003
        %v2005 = vsub.f32 1.5, %v2004
        %v2006 = vmul.f32 %v2001, %v2005
        %vm2007 = vweird.f32 %v1931
        %vm2008 = vweird.f32 %v2001
        %vm2009 = vmor %vm2007, %vm2008
        %v2010 = vsel %vm2009, %v2001, %v2006
        %v2011 = vrsqrt.pop %v1932
        %v2012 = vmul.f32 %v2011, %v1932
        %v2013 = vmul.f32 %v2012, %v2011
        %v2014 = vmul.f32 0.5, %v2013
        %v2015 = vsub.f32 1.5, %v2014
        %v2016 = vmul.f32 %v2011, %v2015
        %vm2017 = vweird.f32 %v1932
        %vm2018 = vweird.f32 %v2011
        %vm2019 = vmor %vm2017, %vm2018
        %v2020 = vsel %vm2019, %v2011, %v2016
        %v2021 = vrsqrt.pop %v1933
        %v2022 = vmul.f32 %v2021, %v1933
        %v2023 = vmul.f32 %v2022, %v2021
        %v2024 = vmul.f32 0.5, %v2023
        %v2025 = vsub.f32 1.5, %v2024
        %v2026 = vmul.f32 %v2021, %v2025
        %vm2027 = vweird.f32 %v1933
        %vm2028 = vweird.f32 %v2021
        %vm2029 = vmor %vm2027, %vm2028
        %v2030 = vsel %vm2029, %v2021, %v2026
        %v2031 = vrsqrt.pop %v1934
        %v2032 = vmul.f32 %v2031, %v1934
        %v2033 = vmul.f32 %v2032, %v2031
        %v2034 = vmul.f32 0.5, %v2033
        %v2035 = vsub.f32 1.5, %v2034
        %v2036 = vmul.f32 %v2031, %v2035
        %vm2037 = vweird.f32 %v1934
        %vm2038 = vweird.f32 %v2031
        %vm2039 = vmor %vm2037, %vm2038
        %v2040 = vsel %vm2039, %v2031, %v2036
        %v2041 = vrsqrt.pop %v1935
        %v2042 = vmul.f32 %v2041, %v1935
        %v2043 = vmul.f32 %v2042, %v2041
        %v2044 = vmul.f32 0.5, %v2043
        %v2045 = vsub.f32 1.5, %v2044
        %v2046 = vmul.f32 %v2041, %v2045
        %vm2047 = vweird.f32 %v1935
        %vm2048 = vweird.f32 %v2041
        %vm2049 = vmor %vm2047, %vm2048
        %v2050 = vsel %vm2049, %v2041, %v2046
        %v2051 = vrsqrt.pop %v1936
        %v2052 = vmul.f32 %v2051, %v1936
        %v2053 = vmul.f32 %v2052, %v2051
        %v2054 = vmul.f32 0.5, %v2053
        %v2055 = vsub.f32 1.5, %v2054
        %v2056 = vmul.f32 %v2051, %v2055
        %vm2057 = vweird.f32 %v1936
        %vm2058 = vweird.f32 %v2051
        %vm2059 = vmor %vm2057, %vm2058
        %v2060 = vsel %vm2059, %v2051, %v2056
        %v2061 = vrsqrt.pop %v1937
        %v2062 = vmul.f32 %v2061, %v1937
        %v2063 = vmul.f32 %v2062, %v2061
        %v2064 = vmul.f32 0.5, %v2063
        %v2065 = vsub.f32 1.5, %v2064
        %v2066 = vmul.f32 %v2061, %v2065
        %vm2067 = vweird.f32 %v1937
        %vm2068 = vweird.f32 %v2061
        %vm2069 = vmor %vm2067, %vm2068
        %v2070 = vsel %vm2069, %v2061, %v2066
        %v2071 = vrsqrt.pop %v1938
        %v2072 = vmul.f32 %v2071, %v1938
        %v2073 = vmul.f32 %v2072, %v2071
        %v2074 = vmul.f32 0.5, %v2073
        %v2075 = vsub.f32 1.5, %v2074
        %v2076 = vmul.f32 %v2071, %v2075
        %vm2077 = vweird.f32 %v1938
        %vm2078 = vweird.f32 %v2071
        %vm2079 = vmor %vm2077, %vm2078
        %v2080 = vsel %vm2079, %v2071, %v2076
        %v2081 = vrsqrt.pop %v1939
        %v2082 = vmul.f32 %v2081, %v1939
        %v2083 = vmul.f32 %v2082, %v2081
        %v2084 = vmul.f32 0.5, %v2083
        %v2085 = vsub.f32 1.5, %v2084
        %v2086 = vmul.f32 %v2081, %v2085
        %vm2087 = vweird.f32 %v1939
        %vm2088 = vweird.f32 %v2081
        %vm2089 = vmor %vm2087, %vm2088
        %v2090 = vsel %vm2089, %v2081, %v2086
        %v2091 = vrsqrt.pop %v1940
        %v2092 = vmul.f32 %v2091, %v1940
        %v2093 = vmul.f32 %v2092, %v2091
        %v2094 = vmul.f32 0.5, %v2093
        %v2095 = vsub.f32 1.5, %v2094
        %v2096 = vmul.f32 %v2091, %v2095
        %vm2097 = vweird.f32 %v1940
        %vm2098 = vweird.f32 %v2091
        %vm2099 = vmor %vm2097, %vm2098
        %v2100 = vsel %vm2099, %v2091, %v2096
        %v2102 = vperm.slane %v1755, 0
        %v2104 = vmul.f32 %v1950, %v2102
        %v2105 = vmul.f32 %v1960, %v2102
        %v2106 = vmul.f32 %v1970, %v2102
        %v2107 = vmul.f32 %v1980, %v2102
        %v2108 = vmul.f32 %v1990, %v2102
        %v2109 = vmul.f32 %v2000, %v2102
        %v2110 = vmul.f32 %v2010, %v2102
        %v2111 = vmul.f32 %v2020, %v2102
        %v2112 = vmul.f32 %v2030, %v2102
        %v2113 = vmul.f32 %v2040, %v2102
        %v2114 = vmul.f32 %v2050, %v2102
        %v2115 = vmul.f32 %v2060, %v2102
        %v2116 = vmul.f32 %v2070, %v2102
        %v2117 = vmul.f32 %v2080, %v2102
        %v2118 = vmul.f32 %v2090, %v2102
        %v2119 = vmul.f32 %v2100, %v2102
        %v2120 = vmul.f32 %v1829, %v2104
        %v2121 = vmul.f32 %v1830, %v2105
        %v2122 = vmul.f32 %v1831, %v2106
        %v2123 = vmul.f32 %v1832, %v2107
        %v2124 = vmul.f32 %v1833, %v2108
        %v2125 = vmul.f32 %v1834, %v2109
        %v2126 = vmul.f32 %v1835, %v2110
        %v2127 = vmul.f32 %v1836, %v2111
        %v2128 = vmul.f32 %v1837, %v2112
        %v2129 = vmul.f32 %v1838, %v2113
        %v2130 = vmul.f32 %v1839, %v2114
        %v2131 = vmul.f32 %v1840, %v2115
        %v2132 = vmul.f32 %v1841, %v2116
        %v2133 = vmul.f32 %v1842, %v2117
        %v2134 = vmul.f32 %v1843, %v2118
        %v2135 = vmul.f32 %v1844, %v2119
        %v2137 = vperm.slane %v1756, 0
        %v2139 = vadd.f32 %v2120, %v2137
        %v2140 = vadd.f32 %v2121, %v2137
        %v2141 = vadd.f32 %v2122, %v2137
        %v2142 = vadd.f32 %v2123, %v2137
        %v2143 = vadd.f32 %v2124, %v2137
        %v2144 = vadd.f32 %v2125, %v2137
        %v2145 = vadd.f32 %v2126, %v2137
        %v2146 = vadd.f32 %v2127, %v2137
        %v2147 = vadd.f32 %v2128, %v2137
        %v2148 = vadd.f32 %v2129, %v2137
        %v2149 = vadd.f32 %v2130, %v2137
        %v2150 = vadd.f32 %v2131, %v2137
        %v2151 = vadd.f32 %v2132, %v2137
        %v2152 = vadd.f32 %v2133, %v2137
        %v2153 = vadd.f32 %v2134, %v2137
        %v2154 = vadd.f32 %v2135, %v2137
        %v2155 = vld [vmem:[%s14] sm:$0x1]
        %v2156 = vld [vmem:[#allocation3] sm:$0x1]
        %2158 = vset.pattern.permute.xlu0 0
        %2159 = vperm.xlu0 %2158, %v2156
        %v2160 = vpop.permute.xlu0 %2159
        %v2162 = vperm.slane %v2160, 0
        %v2164 = vsel %vm1757, %v2155, 0
        %v2167 = vsel %vm1757, %v2139, 0
        %v2170 = vsel %vm1757, %v2140, 0
        %v2173 = vsel %vm1757, %v2141, 0
        %v2176 = vsel %vm1757, %v2142, 0
        %v2179 = vsel %vm1757, %v2143, 0
        %v2182 = vsel %vm1757, %v2144, 0
        %v2185 = vsel %vm1757, %v2145, 0
        %v2188 = vsel %vm1757, %v2146, 0
        %v2191 = vsel %vm1757, %v2147, 0
        %v2194 = vsel %vm1757, %v2148, 0
        %v2197 = vsel %vm1757, %v2149, 0
        %v2200 = vsel %vm1757, %v2150, 0
        %v2203 = vsel %vm1757, %v2151, 0
        %v2206 = vsel %vm1757, %v2152, 0
        %v2209 = vsel %vm1757, %v2153, 0
        %v2212 = vsel %vm1757, %v2154, 0
        %2214 = vmatpush.xpose.msra.mxu0 %v2212
        %2215 = vmatpush.xpose.msra.mxu0 %v2209
        %2216 = vmatpush.xpose.msra.mxu0 %v2206
        %2217 = vmatpush.xpose.msra.mxu0 %v2203
        %2218 = vmatpush.xpose.msra.mxu0 %v2200
        %2219 = vmatpush.xpose.msra.mxu0 %v2197
        %2220 = vmatpush.xpose.msra.mxu0 %v2194
        %2221 = vmatpush.xpose.msra.mxu0 %v2191
        %2222 = vmatpush.xpose.msra.mxu0 %v2188
        %2223 = vmatpush.xpose.msra.mxu0 %v2185
        %2224 = vmatpush.xpose.msra.mxu0 %v2182
        %2225 = vmatpush.xpose.msra.mxu0 %v2179
        %2226 = vmatpush.xpose.msra.mxu0 %v2176
        %2227 = vmatpush.xpose.msra.mxu0 %v2173
        %2228 = vmatpush.xpose.msra.mxu0 %v2170
        %2229 = vmatpush.xpose.msra.mxu0 %v2167
        %2230 = vmatmul.f32.gmra.mxu0 %v2164
        %v2231 = vpop.f32.mrf.mxu0
        %v2232 = vadd.f32 %v2162, %v2231
        %2233 = vdwg.mxu0
        %2234 = vst [vmem:[%s517] sm:$0x1] %v2232
        %s2235 = sand.u32 %s382, 1
        %s2236 = scalar_lea.sflag [#allocation5], %s2235
        %s2237 = sand.u32 %s382, 1
        %s2238 = scalar_lea.vmem [#allocation4], %s2237
        // Predicated region
        $region85: #{tpu_custom_call.1} parent=83 // pred_check
          %p2239 = pneg %p392
        $region86: #{tpu_custom_call.1} parent=83 // pred_check_branch
          %2241 = sbr.rel (%p2239) target = $region88
        $region87: #{tpu_custom_call.1} parent=83 // pred_region
          %2243 = vsyncadd %s2236, 0
          %s2244 = scalar_lea.hbm %s16, %s33
          %s2246 = sshll.u32 %s2238, 4
          %s2247 = int_to_ptr.vmem [resolvable:$true] %s2246
          %s2248 = sshll.u32 %s2244, 4
          %s2249 = int_to_ptr.hbm [resolvable:$true] %s2248
          %2251 = dma.vmem_to_hbm [thread:$0]  %s2247, 16, %s2249, %s2236
        $region88: #{tpu_custom_call.1} parent=83 // pred_fallthru
          _
      $region84: #{tpu_custom_call.1} parent=5 // pred_fallthru
        _
      %p2252 = scmp.le.s32.totalorder 2, %s28
      // Predicated region
      $region89: #{tpu_custom_call.1} parent=5 // pred_check
        %p2253 = pneg %p2252
      $region90: #{tpu_custom_call.1} parent=5 // pred_check_branch
        %2255 = sbr.rel (%p2253) target = $region92
      $region91: #{tpu_custom_call.1} parent=5 // pred_region
        %s2256 = ssub.s32 %s28, 2
        // Predicated region
        $region93: #{tpu_custom_call.1} parent=91 // pred_check
          %p2257 = pneg %p398
        $region94: #{tpu_custom_call.1} parent=91 // pred_check_branch
          %2259 = sbr.rel (%p2257) target = $region96
        $region95: #{tpu_custom_call.1} parent=91 // pred_region
          %s2260 = sand.u32 %s383, 1
          %s2261 = scalar_lea.sflag [#allocation5], %s2260
          %s2262 = sand.u32 %s383, 1
          %s2263 = scalar_lea.vmem [#allocation4], %s2262
          %2265 = dma.done %s2261, 16
        $region96: #{tpu_custom_call.1} parent=91 // pred_fallthru
          _
      $region92: #{tpu_custom_call.1} parent=5 // pred_fallthru
        _
    $region6: #{tpu_custom_call.1} parent=1 // loop_footer
      %s32 = sadd.s32 1, %s28
    $region7: #{tpu_custom_call.1} parent=1 // loop_footer_branch
      %27 = sbr.rel target = $region3
    $region8: #{tpu_custom_call.1} parent=1 // loop_exit
      _
    %2266 = vsyncpa [#allocation5], 1
    %s2267 = scalar_lea.sflag [#allocation5], 1
    %2268 = vsyncpa %s2267, 1

</llo_original>
